<compile_context>
chip_gen: v7x
topology: tpu7x:2x2x1
jax: 0.10.0
libtpu: 0.0.40
codegen_flags: <defaults>
</compile_context>

<pallas_src>
import numpy as np

import jax
import jax.numpy as jnp
from jax import lax
from jax.experimental import pallas as pl
from jax.experimental.pallas import tpu as pltpu


# ----------------------------------------------------------------------------
# Sinusoid position table (verbatim port of the torch helper, returns jnp f32)
# ----------------------------------------------------------------------------
def get_sinusoid_encoding_table(n_position, d_hid, padding_idx=None):
    def cal_angle(position, hid_idx):
        return position / np.power(10000, 2 * (hid_idx // 2) / d_hid)

    def get_posi_angle_vec(position):
        return [cal_angle(position, hid_j) for hid_j in range(d_hid)]

    table = np.array([get_posi_angle_vec(pos_i) for pos_i in range(n_position)])
    table[:, 0::2] = np.sin(table[:, 0::2])
    table[:, 1::2] = np.cos(table[:, 1::2])
    if padding_idx is not None:
        table[padding_idx] = 0.0
    return jnp.asarray(table, dtype=jnp.float32)


# ----------------------------------------------------------------------------
# Fused Pallas kernel: whole decoder stack + last-layer mel projection.
# Grid = (B, n_layers).  Per-grid-step block = one full (T, D) sequence.
# ----------------------------------------------------------------------------
def fused_decoder_kernel(x_ref, keep_ref, pos_ref,
                         wv_ref, bv_ref, wg_ref, bg_ref, conv_w_ref,
                         g1_ref, be1_ref, w1_ref, b1_ref, w2_ref, b2_ref,
                         g2_ref, be2_ref, mel_w_ref, mel_b_ref,
                         mel_ref, dec_ref, hbuf_ref):
    l = pl.program_id(1)
    n_layers = pl.num_programs(1)
    T, D = dec_ref.shape
    K = conv_w_ref.shape[1]
    pad_l = K // 2

    keep = keep_ref[0]                               # (T, 1) f32, 1.0 = valid

    @pl.when(l == 0)
    def _():
        # positional-encoding add done once, activation then stays in VMEM
        dec_ref[...] = x_ref[0] + pos_ref[...]
        hbuf_ref[...] = jnp.zeros_like(hbuf_ref)     # zero the conv halo rows

    # ---- LConvBlock layer `l` (eval mode; dropout = identity) ---------------
    x = dec_ref[...] * keep                          # dec_output.masked_fill(mask, 0)
    residual = x
    x_bf = x.astype(jnp.bfloat16)

    # GLU via two lane-dense (D, D) dots: value * sigmoid(gate)
    val = jnp.dot(x_bf, wv_ref[0], preferred_element_type=jnp.float32) + bv_ref[0]
    gate = jnp.dot(x_bf, wg_ref[0], preferred_element_type=jnp.float32) + bg_ref[0]
    h = val * jax.nn.sigmoid(gate)
    h = h * keep                                     # mask before the lightweight conv

    # lightweight conv: K static taps read as static slices of a zero-padded
    # VMEM scratch (no concatenate copies). conv[t] += h[t + k - pad_l] * w[k].
    hbuf_ref[pad_l:pad_l + T, :] = h
    cw = conv_w_ref[0]                               # (K, D) softmax'd per-channel weights
    conv = jnp.zeros((T, D), jnp.float32)
    for k in range(K):                               # K is tiny & static -> unrolled
        conv = conv + hbuf_ref[k:k + T, :] * cw[k:k + 1, :]

    def layer_norm(v, g, b):
        mu = jnp.mean(v, axis=-1, keepdims=True)
        var = jnp.mean(jnp.square(v - mu), axis=-1, keepdims=True)
        return (v - mu) * lax.rsqrt(var + 1e-5) * g + b

    h = layer_norm(conv + residual, g1_ref[0], be1_ref[0])

    # FFN (bf16 MXU operands, f32 accumulation & elementwise)
    residual = h
    f = jnp.dot(h.astype(jnp.bfloat16), w1_ref[0],
                preferred_element_type=jnp.float32) + b1_ref[0]
    f = jnp.maximum(f, 0.0)
    f = jnp.dot(f.astype(jnp.bfloat16), w2_ref[0],
                preferred_element_type=jnp.float32) + b2_ref[0]
    h = layer_norm(f + residual, g2_ref[0], be2_ref[0])

    out = jnp.tanh(h)                                # Decoder applies tanh to block output
    dec_ref[...] = out                               # stays resident in VMEM for next layer

    # ---- iterative mel prediction: eval mode emits only the last layer ------
    @pl.when(l == n_layers - 1)
    def _():
        mel = jnp.dot(out.astype(jnp.bfloat16), mel_w_ref[...],
                      preferred_element_type=jnp.float32) + mel_b_ref[...]
        mel_ref[0] = mel * keep                      # masked_fill(mask, 0), lane-dense


# ----------------------------------------------------------------------------
# Decoder forward (eval mode: only the last layer's mel projection is emitted)
# ----------------------------------------------------------------------------
def decoder_forward(x, mask, params, cfg):
    B, T, D = x.shape

    if T > cfg["max_seq_len"]:
        # torch eval branch: regenerate a longer sinusoid table, mask untouched
        pos = get_sinusoid_encoding_table(T, D)
    else:
        pos = params["position_enc"][:T, :]
        mask = mask[:, :T]

    L = cfg["decoder"]["decoder_layer"]
    n_mel = cfg["n_mel_channels"]
    K = cfg["decoder"]["conv_kernel_size"]
    n_pad = params["mel_w"].shape[-1]                # lane-dense mel width (>=128)

    keep = (1.0 - mask.astype(jnp.float32))[:, :, None]      # (B, T, 1), 1.0 = valid

    def lspec(shape):        # per-layer stacked weight: block = one layer slice
        return pl.BlockSpec((1,) + tuple(shape[1:]), lambda b, l: (l, 0, 0))

    def fspec(shape):        # grid-invariant 2-D weight
        return pl.BlockSpec(tuple(shape), lambda b, l: (0, 0))

    mel_pad = pl.pallas_call(
        fused_decoder_kernel,
        out_shape=jax.ShapeDtypeStruct((B, T, n_pad), jnp.float32),
        grid=(B, L),
        in_specs=[
            pl.BlockSpec((1, T, D), lambda b, l: (b, 0, 0)),   # x (+pos at l==0)
            pl.BlockSpec((1, T, 1), lambda b, l: (b, 0, 0)),   # keep mask
            pl.BlockSpec((T, D), lambda b, l: (0, 0)),         # positional enc
            lspec(params["wv"].shape), lspec(params["bv"].shape),
            lspec(params["wg"].shape), lspec(params["bg"].shape),
            lspec(params["conv_w"].shape),
            lspec(params["g1"].shape), lspec(params["be1"].shape),
            lspec(params["w1"].shape), lspec(params["b1"].shape),
            lspec(params["w2"].shape), lspec(params["b2"].shape),
            lspec(params["g2"].shape), lspec(params["be2"].shape),
            fspec(params["mel_w"].shape[1:]), fspec(params["mel_b"].shape[1:]),
        ],
        out_specs=pl.BlockSpec((1, T, n_pad), lambda b, l: (b, 0, 0)),
        scratch_shapes=[
            pltpu.VMEM((T, D), jnp.float32),          # resident decoder activation
            pltpu.VMEM((T + K - 1, D), jnp.float32),  # zero-padded conv staging
        ],
        compiler_params=pltpu.CompilerParams(
            dimension_semantics=("parallel", "arbitrary")),
    )(x, keep, pos,
      params["wv"], params["bv"], params["wg"], params["bg"], params["conv_w"],
      params["g1"], params["be1"], params["w1"], params["b1"],
      params["w2"], params["b2"], params["g2"], params["be2"],
      params["mel_w"][-1], params["mel_b"][-1])

    mel_iters = [mel_pad[:, :, :n_mel]]              # eval mode: last layer only
    return mel_iters, mask


# ----------------------------------------------------------------------------
# Pure-JAX reference mirroring the kernel math (correctness oracle)
# ----------------------------------------------------------------------------
def decoder_reference(x, mask, params, cfg):
    B, T, D = x.shape
    L = cfg["decoder"]["decoder_layer"]
    K = cfg["decoder"]["conv_kernel_size"]
    n_mel = cfg["n_mel_channels"]
    pad_l = K // 2

    if T > cfg["max_seq_len"]:
        pos = get_sinusoid_encoding_table(T, D)
    else:
        pos = params["position_enc"][:T, :]
        mask = mask[:, :T]

    keep = (1.0 - mask.astype(jnp.float32))[:, :, None]
    dec = x + pos[None]

    def layer_norm(v, g, b):
        mu = jnp.mean(v, axis=-1, keepdims=True)
        var = jnp.mean(jnp.square(v - mu), axis=-1, keepdims=True)
        return (v - mu) * lax.rsqrt(var + 1e-5) * g + b

    for l in range(L):
        xm = dec * keep
        residual = xm
        xb = xm.astype(jnp.bfloat16)
        val = jnp.einsum("btd,de->bte", xb, params["wv"][l],
                         preferred_element_type=jnp.float32) + params["bv"][l]
        gate = jnp.einsum("btd,de->bte", xb, params["wg"][l],
                          preferred_element_type=jnp.float32) + params["bg"][l]
        h = val * jax.nn.sigmoid(gate)
        h = h * keep
        hp = jnp.pad(h, ((0, 0), (pad_l, K - 1 - pad_l), (0, 0)))
        cw = params["conv_w"][l]
        conv = sum(hp[:, k:k + T, :] * cw[k][None, None, :] for k in range(K))
        h = layer_norm(conv + residual, params["g1"][l], params["be1"][l])
        residual = h
        f = jnp.einsum("btd,de->bte", h.astype(jnp.bfloat16), params["w1"][l],
                       preferred_element_type=jnp.float32) + params["b1"][l]
        f = jnp.maximum(f, 0.0)
        f = jnp.einsum("btd,de->bte", f.astype(jnp.bfloat16), params["w2"][l],
                       preferred_element_type=jnp.float32) + params["b2"][l]
        h = layer_norm(f + residual, params["g2"][l], params["be2"][l])
        dec = jnp.tanh(h)

    mel = jnp.einsum("btd,dm->btm", dec.astype(jnp.bfloat16), params["mel_w"][-1],
                     preferred_element_type=jnp.float32) + params["mel_b"][-1]
    mel = mel * keep
    return [mel[:, :, :n_mel]], mask


# ----------------------------------------------------------------------------
# Deterministic parameter construction (weights pre-stacked over layers)
# ----------------------------------------------------------------------------
def init_params(cfg, key):
    D = cfg["decoder"]["decoder_hidden"]
    H = cfg["decoder"]["trans_head"]
    K = cfg["decoder"]["conv_kernel_size"]
    n_mel = cfg["n_mel_channels"]
    L = cfg["decoder"]["decoder_layer"]
    ch_per_head = D // H
    n_pad = 128 * ((n_mel + 127) // 128)             # lane-dense mel width

    keys = jax.random.split(key, 6 * L)
    it = iter(keys)
    wv, wg, conv_w, w1, w2, mel_w = [], [], [], [], [], []
    for _ in range(L):
        k1, k2, k3, k4, k5, k6 = (next(it) for _ in range(6))
        wv.append(0.1 * jax.random.normal(k1, (D, D), jnp.float32))
        wg.append(0.1 * jax.random.normal(k2, (D, D), jnp.float32))
        raw = 0.1 * jax.random.normal(k3, (H, K), jnp.float32)
        soft = jax.nn.softmax(raw, axis=-1)                       # weight_softmax
        conv_w.append(jnp.repeat(soft, ch_per_head, axis=0).T)    # (K, D) per-channel
        w1.append(0.1 * jax.random.normal(k4, (D, 4 * D), jnp.float32))
        w2.append(0.1 * jax.random.normal(k5, (4 * D, D), jnp.float32))
        mw = 0.1 * jax.random.normal(k6, (D, n_mel), jnp.float32)
        mel_w.append(jnp.pad(mw, ((0, 0), (0, n_pad - n_mel))))   # pad to 128 lanes

    return {
        "position_enc": get_sinusoid_encoding_table(cfg["max_seq_len"] + 1, D),
        "wv": jnp.stack(wv).astype(jnp.bfloat16),
        "bv": jnp.zeros((L, 1, D), jnp.float32),
        "wg": jnp.stack(wg).astype(jnp.bfloat16),
        "bg": jnp.zeros((L, 1, D), jnp.float32),
        "conv_w": jnp.stack(conv_w).astype(jnp.float32),
        "g1": jnp.ones((L, 1, D), jnp.float32),
        "be1": jnp.zeros((L, 1, D), jnp.float32),
        "w1": jnp.stack(w1).astype(jnp.bfloat16),
        "b1": jnp.zeros((L, 1, 4 * D), jnp.float32),
        "w2": jnp.stack(w2).astype(jnp.bfloat16),
        "b2": jnp.zeros((L, 1, D), jnp.float32),
        "g2": jnp.ones((L, 1, D), jnp.float32),
        "be2": jnp.zeros((L, 1, D), jnp.float32),
        "mel_w": jnp.stack(mel_w).astype(jnp.bfloat16),           # (L, D, n_pad)
        "mel_b": jnp.zeros((L, 1, n_pad), jnp.float32),
    }


# ----------------------------------------------------------------------------
if __name__ == "__main__":
    # TODO(synk): dropout is identity (eval mode); training-mode per-layer mel
    # iterations are not emitted (eval path returns only the last layer).
    cfg = {
        "max_seq_len": 32,
        "n_mel_channels": 8,
        "decoder": {
            "decoder_hidden": 32,
            "decoder_layer": 2,
            "trans_head": 2,
            "conv_kernel_size": 3,
            "decoder_dropout": 0.1,
        },
    }

    B, T = 2, 16
    D = cfg["decoder"]["decoder_hidden"]
    key = jax.random.PRNGKey(0)
    key, kx = jax.random.split(key)

    params = init_params(cfg, key)
    x = jax.random.normal(kx, (B, T, D), jnp.float32)
    lengths = jnp.array([T, T - 4], jnp.int32)
    mask = jnp.arange(T)[None, :] >= lengths[:, None]          # bool, True = padded

    mel_iters, mask_out = decoder_forward(x, mask, params, cfg)
    jax.block_until_ready(mel_iters)

    assert mel_iters[0].shape == (B, T, cfg["n_mel_channels"])
    assert mask_out.shape == (B, T)

    # Correctness check vs pure-JAX reference (same math, XLA-compiled).
    ref_mels, ref_mask = decoder_reference(x, mask, params, cfg)
    err = float(jnp.max(jnp.abs(mel_iters[0] - ref_mels[0])))
    assert err < 2e-2, f"mismatch vs reference: max abs err {err}"
    assert bool(jnp.all(mask_out == ref_mask))

    print("KERNEL_OK")
</pallas_src>

<mosaic_0001>
module attributes {stable_mosaic.version = 11 : i64} {
  func.func @fused_decoder_kernel(%arg0: i32, %arg1: i32, %arg2: memref<1x16x32xf32, #tpu.memory_space<vmem>>, %arg3: memref<1x16x1xf32, #tpu.memory_space<vmem>>, %arg4: memref<16x32xf32, #tpu.memory_space<vmem>>, %arg5: memref<1x32x32xbf16, #tpu.memory_space<vmem>>, %arg6: memref<1x1x32xf32, #tpu.memory_space<vmem>>, %arg7: memref<1x32x32xbf16, #tpu.memory_space<vmem>>, %arg8: memref<1x1x32xf32, #tpu.memory_space<vmem>>, %arg9: memref<1x3x32xf32, #tpu.memory_space<vmem>>, %arg10: memref<1x1x32xf32, #tpu.memory_space<vmem>>, %arg11: memref<1x1x32xf32, #tpu.memory_space<vmem>>, %arg12: memref<1x32x128xbf16, #tpu.memory_space<vmem>>, %arg13: memref<1x1x128xf32, #tpu.memory_space<vmem>>, %arg14: memref<1x128x32xbf16, #tpu.memory_space<vmem>>, %arg15: memref<1x1x32xf32, #tpu.memory_space<vmem>>, %arg16: memref<1x1x32xf32, #tpu.memory_space<vmem>>, %arg17: memref<1x1x32xf32, #tpu.memory_space<vmem>>, %arg18: memref<32x128xbf16, #tpu.memory_space<vmem>>, %arg19: memref<1x128xf32, #tpu.memory_space<vmem>>, %arg20: memref<1x16x128xf32, #tpu.memory_space<vmem>>, %arg21: memref<16x32xf32, #tpu.memory_space<vmem>>, %arg22: memref<18x32xf32, #tpu.memory_space<vmem>>) attributes {dimension_semantics = [#tpu.dimension_semantics<parallel>, #tpu.dimension_semantics<arbitrary>], iteration_bounds = array<i64: 2, 2>, scalar_prefetch = 0 : i64, scratch_operands = 2 : i64, tpu.core_type = #tpu.core_type<tc>, window_params = [{transform_indices = @transform_0, window_bounds = array<i64: 1, 16, 32>}, {transform_indices = @transform_1, window_bounds = array<i64: 1, 16, 1>}, {pipeline_mode = #tpu.pipeline_mode<synchronous>, transform_indices = @transform_2, window_bounds = array<i64: 16, 32>}, {transform_indices = @transform_3, window_bounds = array<i64: 1, 32, 32>}, {transform_indices = @transform_4, window_bounds = array<i64: 1, 1, 32>}, {transform_indices = @transform_5, window_bounds = array<i64: 1, 32, 32>}, {transform_indices = @transform_6, window_bounds = array<i64: 1, 1, 32>}, {transform_indices = @transform_7, window_bounds = array<i64: 1, 3, 32>}, {transform_indices = @transform_8, window_bounds = array<i64: 1, 1, 32>}, {transform_indices = @transform_9, window_bounds = array<i64: 1, 1, 32>}, {transform_indices = @transform_10, window_bounds = array<i64: 1, 32, 128>}, {transform_indices = @transform_11, window_bounds = array<i64: 1, 1, 128>}, {transform_indices = @transform_12, window_bounds = array<i64: 1, 128, 32>}, {transform_indices = @transform_13, window_bounds = array<i64: 1, 1, 32>}, {transform_indices = @transform_14, window_bounds = array<i64: 1, 1, 32>}, {transform_indices = @transform_15, window_bounds = array<i64: 1, 1, 32>}, {pipeline_mode = #tpu.pipeline_mode<synchronous>, transform_indices = @transform_16, window_bounds = array<i64: 32, 128>}, {pipeline_mode = #tpu.pipeline_mode<synchronous>, transform_indices = @transform_17, window_bounds = array<i64: 1, 128>}, {transform_indices = @transform_18, window_bounds = array<i64: 1, 16, 128>}]} {
    %c0 = arith.constant 0 : index
    %c0_0 = arith.constant 0 : index
    %c0_1 = arith.constant 0 : index
    %0 = vector.load %arg3[%c0, %c0_0, %c0_1] : memref<1x16x1xf32, #tpu.memory_space<vmem>>, vector<1x16x1xf32>
    %1 = vector.shape_cast %0 : vector<1x16x1xf32> to vector<16x1xf32>
    %c0_i32 = arith.constant 0 : i32
    %2 = arith.cmpi eq, %arg1, %c0_i32 : i32
    %3 = arith.extui %2 : i1 to i32
    %c0_i32_2 = arith.constant 0 : i32
    %4 = arith.cmpi ne, %3, %c0_i32_2 : i32
    scf.if %4 {
      %c0_69 = arith.constant 0 : index
      %c0_70 = arith.constant 0 : index
      %c0_71 = arith.constant 0 : index
      %127 = vector.load %arg2[%c0_69, %c0_70, %c0_71] : memref<1x16x32xf32, #tpu.memory_space<vmem>>, vector<1x16x32xf32>
      %128 = vector.shape_cast %127 : vector<1x16x32xf32> to vector<16x32xf32>
      %c0_72 = arith.constant 0 : index
      %c0_73 = arith.constant 0 : index
      %129 = vector.load %arg4[%c0_72, %c0_73] : memref<16x32xf32, #tpu.memory_space<vmem>>, vector<16x32xf32>
      %130 = arith.addf %128, %129 : vector<16x32xf32>
      %c0_74 = arith.constant 0 : index
      %c0_75 = arith.constant 0 : index
      %131 = vector.load %arg21[%c0_74, %c0_75] : memref<16x32xf32, #tpu.memory_space<vmem>>, vector<16x32xf32>
      tpu.vector_store %arg21[%c0_74, %c0_75], %130 {strides = array<i32>} : memref<16x32xf32, #tpu.memory_space<vmem>>, vector<16x32xf32>,
      %cst_76 = arith.constant 0.000000e+00 : f32
      %132 = vector.broadcast %cst_76 : f32 to vector<18x32xf32>
      %c0_77 = arith.constant 0 : index
      %c0_78 = arith.constant 0 : index
      %133 = vector.load %arg22[%c0_77, %c0_78] : memref<18x32xf32, #tpu.memory_space<vmem>>, vector<18x32xf32>
      tpu.vector_store %arg22[%c0_77, %c0_78], %132 {strides = array<i32>} : memref<18x32xf32, #tpu.memory_space<vmem>>, vector<18x32xf32>,
    } else {
    }
    %c0_3 = arith.constant 0 : index
    %c0_4 = arith.constant 0 : index
    %5 = vector.load %arg21[%c0_3, %c0_4] : memref<16x32xf32, #tpu.memory_space<vmem>>, vector<16x32xf32>
    %6 = vector.broadcast %1 : vector<16x1xf32> to vector<16x32xf32>
    %7 = arith.mulf %5, %6 : vector<16x32xf32>
    %8 = arith.truncf %7 : vector<16x32xf32> to vector<16x32xbf16>
    %c0_5 = arith.constant 0 : index
    %c0_6 = arith.constant 0 : index
    %c0_7 = arith.constant 0 : index
    %9 = vector.load %arg5[%c0_5, %c0_6, %c0_7] : memref<1x32x32xbf16, #tpu.memory_space<vmem>>, vector<1x32x32xbf16>
    %10 = vector.shape_cast %9 : vector<1x32x32xbf16> to vector<32x32xbf16>
    %cst = arith.constant dense<0.000000e+00> : vector<16x32xf32>
    %11 = tpu.matmul %8, %10, %cst {dimension_numbers = #tpu.dot_dimension_numbers<[1], [0], [0], [1], [0, 0, 1, 1], [], []>} : vector<16x32xbf16>, vector<32x32xbf16>, vector<16x32xf32> -> vector<16x32xf32>
    %c0_8 = arith.constant 0 : index
    %c0_9 = arith.constant 0 : index
    %c0_10 = arith.constant 0 : index
    %12 = vector.load %arg6[%c0_8, %c0_9, %c0_10] : memref<1x1x32xf32, #tpu.memory_space<vmem>>, vector<1x1x32xf32>
    %13 = vector.shape_cast %12 : vector<1x1x32xf32> to vector<1x32xf32>
    %14 = vector.broadcast %13 : vector<1x32xf32> to vector<16x32xf32>
    %15 = arith.addf %11, %14 : vector<16x32xf32>
    %c0_11 = arith.constant 0 : index
    %c0_12 = arith.constant 0 : index
    %c0_13 = arith.constant 0 : index
    %16 = vector.load %arg7[%c0_11, %c0_12, %c0_13] : memref<1x32x32xbf16, #tpu.memory_space<vmem>>, vector<1x32x32xbf16>
    %17 = vector.shape_cast %16 : vector<1x32x32xbf16> to vector<32x32xbf16>
    %cst_14 = arith.constant dense<0.000000e+00> : vector<16x32xf32>
    %18 = tpu.matmul %8, %17, %cst_14 {dimension_numbers = #tpu.dot_dimension_numbers<[1], [0], [0], [1], [0, 0, 1, 1], [], []>} : vector<16x32xbf16>, vector<32x32xbf16>, vector<16x32xf32> -> vector<16x32xf32>
    %c0_15 = arith.constant 0 : index
    %c0_16 = arith.constant 0 : index
    %c0_17 = arith.constant 0 : index
    %19 = vector.load %arg8[%c0_15, %c0_16, %c0_17] : memref<1x1x32xf32, #tpu.memory_space<vmem>>, vector<1x1x32xf32>
    %20 = vector.shape_cast %19 : vector<1x1x32xf32> to vector<1x32xf32>
    %21 = vector.broadcast %20 : vector<1x32xf32> to vector<16x32xf32>
    %22 = arith.addf %18, %21 : vector<16x32xf32>
    %23 = arith.negf %22 : vector<16x32xf32>
    %24 = math.exp %23 : vector<16x32xf32>
    %cst_18 = arith.constant 1.000000e+00 : f32
    %25 = vector.broadcast %cst_18 : f32 to vector<16x32xf32>
    %26 = arith.addf %25, %24 : vector<16x32xf32>
    %27 = arith.divf %25, %26 : vector<16x32xf32>
    %28 = arith.mulf %15, %27 : vector<16x32xf32>
    %29 = vector.broadcast %1 : vector<16x1xf32> to vector<16x32xf32>
    %30 = arith.mulf %28, %29 : vector<16x32xf32>
    %c1 = arith.constant 1 : index
    %c0_19 = arith.constant 0 : index
    %31 = vector.load %arg22[%c1, %c0_19] : memref<18x32xf32, #tpu.memory_space<vmem>>, vector<16x32xf32>
    tpu.vector_store %arg22[%c1, %c0_19], %30 {strides = array<i32>} : memref<18x32xf32, #tpu.memory_space<vmem>>, vector<16x32xf32>,
    %c0_20 = arith.constant 0 : index
    %c0_21 = arith.constant 0 : index
    %c0_22 = arith.constant 0 : index
    %32 = vector.load %arg9[%c0_20, %c0_21, %c0_22] : memref<1x3x32xf32, #tpu.memory_space<vmem>>, vector<1x3x32xf32>
    %33 = vector.shape_cast %32 : vector<1x3x32xf32> to vector<3x32xf32>
    %cst_23 = arith.constant 0.000000e+00 : f32
    %34 = vector.broadcast %cst_23 : f32 to vector<16x32xf32>
    %c0_24 = arith.constant 0 : index
    %c0_25 = arith.constant 0 : index
    %35 = vector.load %arg22[%c0_24, %c0_25] : memref<18x32xf32, #tpu.memory_space<vmem>>, vector<16x32xf32>
    %36 = vector.extract_strided_slice %33 {offsets = [0, 0], sizes = [1, 32], strides = [1, 1]} : vector<3x32xf32> to vector<1x32xf32>
    %37 = vector.broadcast %36 : vector<1x32xf32> to vector<16x32xf32>
    %38 = arith.mulf %35, %37 : vector<16x32xf32>
    %39 = arith.addf %34, %38 : vector<16x32xf32>
    %c1_26 = arith.constant 1 : index
    %c0_27 = arith.constant 0 : index
    %40 = vector.load %arg22[%c1_26, %c0_27] : memref<18x32xf32, #tpu.memory_space<vmem>>, vector<16x32xf32>
    %41 = vector.extract_strided_slice %33 {offsets = [1, 0], sizes = [1, 32], strides = [1, 1]} : vector<3x32xf32> to vector<1x32xf32>
    %42 = vector.broadcast %41 : vector<1x32xf32> to vector<16x32xf32>
    %43 = arith.mulf %40, %42 : vector<16x32xf32>
    %44 = arith.addf %39, %43 : vector<16x32xf32>
    %c2 = arith.constant 2 : index
    %c0_28 = arith.constant 0 : index
    %45 = vector.load %arg22[%c2, %c0_28] : memref<18x32xf32, #tpu.memory_space<vmem>>, vector<16x32xf32>
    %46 = vector.extract_strided_slice %33 {offsets = [2, 0], sizes = [1, 32], strides = [1, 1]} : vector<3x32xf32> to vector<1x32xf32>
    %47 = vector.broadcast %46 : vector<1x32xf32> to vector<16x32xf32>
    %48 = arith.mulf %45, %47 : vector<16x32xf32>
    %49 = arith.addf %44, %48 : vector<16x32xf32>
    %50 = arith.addf %49, %7 : vector<16x32xf32>
    %c0_29 = arith.constant 0 : index
    %c0_30 = arith.constant 0 : index
    %c0_31 = arith.constant 0 : index
    %51 = vector.load %arg10[%c0_29, %c0_30, %c0_31] : memref<1x1x32xf32, #tpu.memory_space<vmem>>, vector<1x1x32xf32>
    %52 = vector.shape_cast %51 : vector<1x1x32xf32> to vector<1x32xf32>
    %c0_32 = arith.constant 0 : index
    %c0_33 = arith.constant 0 : index
    %c0_34 = arith.constant 0 : index
    %53 = vector.load %arg11[%c0_32, %c0_33, %c0_34] : memref<1x1x32xf32, #tpu.memory_space<vmem>>, vector<1x1x32xf32>
    %54 = vector.shape_cast %53 : vector<1x1x32xf32> to vector<1x32xf32>
    %cst_35 = arith.constant dense<0.000000e+00> : vector<16xf32>
    %55 = vector.multi_reduction <add>, %50, %cst_35 [1] : vector<16x32xf32> to vector<16xf32>
    %56 = vector.shape_cast %55 : vector<16xf32> to vector<16x1xf32>
    %cst_36 = arith.constant 3.200000e+01 : f32
    %57 = vector.broadcast %cst_36 : f32 to vector<16x1xf32>
    %58 = arith.divf %56, %57 : vector<16x1xf32>
    %59 = vector.broadcast %58 : vector<16x1xf32> to vector<16x32xf32>
    %60 = arith.subf %50, %59 : vector<16x32xf32>
    %61 = arith.mulf %60, %60 : vector<16x32xf32>
    %cst_37 = arith.constant dense<0.000000e+00> : vector<16xf32>
    %62 = vector.multi_reduction <add>, %61, %cst_37 [1] : vector<16x32xf32> to vector<16xf32>
    %63 = vector.shape_cast %62 : vector<16xf32> to vector<16x1xf32>
    %cst_38 = arith.constant 3.200000e+01 : f32
    %64 = vector.broadcast %cst_38 : f32 to vector<16x1xf32>
    %65 = arith.divf %63, %64 : vector<16x1xf32>
    %66 = vector.broadcast %58 : vector<16x1xf32> to vector<16x32xf32>
    %67 = arith.subf %50, %66 : vector<16x32xf32>
    %cst_39 = arith.constant 9.99999974E-6 : f32
    %68 = vector.broadcast %cst_39 : f32 to vector<16x1xf32>
    %69 = arith.addf %65, %68 : vector<16x1xf32>
    %70 = math.rsqrt %69 : vector<16x1xf32>
    %71 = vector.broadcast %70 : vector<16x1xf32> to vector<16x32xf32>
    %72 = arith.mulf %67, %71 : vector<16x32xf32>
    %73 = vector.broadcast %52 : vector<1x32xf32> to vector<16x32xf32>
    %74 = arith.mulf %72, %73 : vector<16x32xf32>
    %75 = vector.broadcast %54 : vector<1x32xf32> to vector<16x32xf32>
    %76 = arith.addf %74, %75 : vector<16x32xf32>
    %77 = arith.truncf %76 : vector<16x32xf32> to vector<16x32xbf16>
    %c0_40 = arith.constant 0 : index
    %c0_41 = arith.constant 0 : index
    %c0_42 = arith.constant 0 : index
    %78 = vector.load %arg12[%c0_40, %c0_41, %c0_42] : memref<1x32x128xbf16, #tpu.memory_space<vmem>>, vector<1x32x128xbf16>
    %79 = vector.shape_cast %78 : vector<1x32x128xbf16> to vector<32x128xbf16>
    %cst_43 = arith.constant dense<0.000000e+00> : vector<16x128xf32>
    %80 = tpu.matmul %77, %79, %cst_43 {dimension_numbers = #tpu.dot_dimension_numbers<[1], [0], [0], [1], [0, 0, 1, 1], [], []>} : vector<16x32xbf16>, vector<32x128xbf16>, vector<16x128xf32> -> vector<16x128xf32>
    %c0_44 = arith.constant 0 : index
    %c0_45 = arith.constant 0 : index
    %c0_46 = arith.constant 0 : index
    %81 = vector.load %arg13[%c0_44, %c0_45, %c0_46] : memref<1x1x128xf32, #tpu.memory_space<vmem>>, vector<1x1x128xf32>
    %82 = vector.shape_cast %81 : vector<1x1x128xf32> to vector<1x128xf32>
    %83 = vector.broadcast %82 : vector<1x128xf32> to vector<16x128xf32>
    %84 = arith.addf %80, %83 : vector<16x128xf32>
    %cst_47 = arith.constant 0.000000e+00 : f32
    %85 = vector.broadcast %cst_47 : f32 to vector<16x128xf32>
    %86 = arith.maximumf %84, %85 : vector<16x128xf32>
    %87 = arith.truncf %86 : vector<16x128xf32> to vector<16x128xbf16>
    %c0_48 = arith.constant 0 : index
    %c0_49 = arith.constant 0 : index
    %c0_50 = arith.constant 0 : index
    %88 = vector.load %arg14[%c0_48, %c0_49, %c0_50] : memref<1x128x32xbf16, #tpu.memory_space<vmem>>, vector<1x128x32xbf16>
    %89 = vector.shape_cast %88 : vector<1x128x32xbf16> to vector<128x32xbf16>
    %cst_51 = arith.constant dense<0.000000e+00> : vector<16x32xf32>
    %90 = tpu.matmul %87, %89, %cst_51 {dimension_numbers = #tpu.dot_dimension_numbers<[1], [0], [0], [1], [0, 0, 1, 1], [], []>} : vector<16x128xbf16>, vector<128x32xbf16>, vector<16x32xf32> -> vector<16x32xf32>
    %c0_52 = arith.constant 0 : index
    %c0_53 = arith.constant 0 : index
    %c0_54 = arith.constant 0 : index
    %91 = vector.load %arg15[%c0_52, %c0_53, %c0_54] : memref<1x1x32xf32, #tpu.memory_space<vmem>>, vector<1x1x32xf32>
    %92 = vector.shape_cast %91 : vector<1x1x32xf32> to vector<1x32xf32>
    %93 = vector.broadcast %92 : vector<1x32xf32> to vector<16x32xf32>
    %94 = arith.addf %90, %93 : vector<16x32xf32>
    %95 = arith.addf %94, %76 : vector<16x32xf32>
    %c0_55 = arith.constant 0 : index
    %c0_56 = arith.constant 0 : index
    %c0_57 = arith.constant 0 : index
    %96 = vector.load %arg16[%c0_55, %c0_56, %c0_57] : memref<1x1x32xf32, #tpu.memory_space<vmem>>, vector<1x1x32xf32>
    %97 = vector.shape_cast %96 : vector<1x1x32xf32> to vector<1x32xf32>
    %c0_58 = arith.constant 0 : index
    %c0_59 = arith.constant 0 : index
    %c0_60 = arith.constant 0 : index
    %98 = vector.load %arg17[%c0_58, %c0_59, %c0_60] : memref<1x1x32xf32, #tpu.memory_space<vmem>>, vector<1x1x32xf32>
    %99 = vector.shape_cast %98 : vector<1x1x32xf32> to vector<1x32xf32>
    %cst_61 = arith.constant dense<0.000000e+00> : vector<16xf32>
    %100 = vector.multi_reduction <add>, %95, %cst_61 [1] : vector<16x32xf32> to vector<16xf32>
    %101 = vector.shape_cast %100 : vector<16xf32> to vector<16x1xf32>
    %cst_62 = arith.constant 3.200000e+01 : f32
    %102 = vector.broadcast %cst_62 : f32 to vector<16x1xf32>
    %103 = arith.divf %101, %102 : vector<16x1xf32>
    %104 = vector.broadcast %103 : vector<16x1xf32> to vector<16x32xf32>
    %105 = arith.subf %95, %104 : vector<16x32xf32>
    %106 = arith.mulf %105, %105 : vector<16x32xf32>
    %cst_63 = arith.constant dense<0.000000e+00> : vector<16xf32>
    %107 = vector.multi_reduction <add>, %106, %cst_63 [1] : vector<16x32xf32> to vector<16xf32>
    %108 = vector.shape_cast %107 : vector<16xf32> to vector<16x1xf32>
    %cst_64 = arith.constant 3.200000e+01 : f32
    %109 = vector.broadcast %cst_64 : f32 to vector<16x1xf32>
    %110 = arith.divf %108, %109 : vector<16x1xf32>
    %111 = vector.broadcast %103 : vector<16x1xf32> to vector<16x32xf32>
    %112 = arith.subf %95, %111 : vector<16x32xf32>
    %cst_65 = arith.constant 9.99999974E-6 : f32
    %113 = vector.broadcast %cst_65 : f32 to vector<16x1xf32>
    %114 = arith.addf %110, %113 : vector<16x1xf32>
    %115 = math.rsqrt %114 : vector<16x1xf32>
    %116 = vector.broadcast %115 : vector<16x1xf32> to vector<16x32xf32>
    %117 = arith.mulf %112, %116 : vector<16x32xf32>
    %118 = vector.broadcast %97 : vector<1x32xf32> to vector<16x32xf32>
    %119 = arith.mulf %117, %118 : vector<16x32xf32>
    %120 = vector.broadcast %99 : vector<1x32xf32> to vector<16x32xf32>
    %121 = arith.addf %119, %120 : vector<16x32xf32>
    %122 = math.tanh %121 : vector<16x32xf32>
    %c0_66 = arith.constant 0 : index
    %c0_67 = arith.constant 0 : index
    %123 = vector.load %arg21[%c0_66, %c0_67] : memref<16x32xf32, #tpu.memory_space<vmem>>, vector<16x32xf32>
    tpu.vector_store %arg21[%c0_66, %c0_67], %122 {strides = array<i32>} : memref<16x32xf32, #tpu.memory_space<vmem>>, vector<16x32xf32>,
    %c1_i32 = arith.constant 1 : i32
    %124 = arith.cmpi eq, %arg1, %c1_i32 : i32
    %125 = arith.extui %124 : i1 to i32
    %c0_i32_68 = arith.constant 0 : i32
    %126 = arith.cmpi ne, %125, %c0_i32_68 : i32
    scf.if %126 {
      %127 = arith.truncf %122 : vector<16x32xf32> to vector<16x32xbf16>
      %c0_69 = arith.constant 0 : index
      %c0_70 = arith.constant 0 : index
      %128 = vector.load %arg18[%c0_69, %c0_70] : memref<32x128xbf16, #tpu.memory_space<vmem>>, vector<32x128xbf16>
      %cst_71 = arith.constant dense<0.000000e+00> : vector<16x128xf32>
      %129 = tpu.matmul %127, %128, %cst_71 {dimension_numbers = #tpu.dot_dimension_numbers<[1], [0], [0], [1], [0, 0, 1, 1], [], []>} : vector<16x32xbf16>, vector<32x128xbf16>, vector<16x128xf32> -> vector<16x128xf32>
      %c0_72 = arith.constant 0 : index
      %c0_73 = arith.constant 0 : index
      %130 = vector.load %arg19[%c0_72, %c0_73] : memref<1x128xf32, #tpu.memory_space<vmem>>, vector<1x128xf32>
      %131 = vector.broadcast %130 : vector<1x128xf32> to vector<16x128xf32>
      %132 = arith.addf %129, %131 : vector<16x128xf32>
      %133 = vector.broadcast %1 : vector<16x1xf32> to vector<16x128xf32>
      %134 = arith.mulf %132, %133 : vector<16x128xf32>
      %c0_74 = arith.constant 0 : index
      %c0_75 = arith.constant 0 : index
      %c0_76 = arith.constant 0 : index
      %135 = vector.load %arg20[%c0_74, %c0_75, %c0_76] : memref<1x16x128xf32, #tpu.memory_space<vmem>>, vector<1x16x128xf32>
      %136 = vector.shape_cast %135 : vector<1x16x128xf32> to vector<16x128xf32>
      %137 = vector.shape_cast %134 : vector<16x128xf32> to vector<1x16x128xf32>
      tpu.vector_store %arg20[%c0_74, %c0_75, %c0_76], %137 {strides = array<i32>} : memref<1x16x128xf32, #tpu.memory_space<vmem>>, vector<1x16x128xf32>,
    } else {
    }
    return
  }
  func.func @transform_0(%arg0: i32, %arg1: i32) -> (i32, i32, i32) {
    %c0_i32 = arith.constant 0 : i32
    %c0_i32_0 = arith.constant 0 : i32
    %c0_i32_1 = arith.constant 0 : i32
    return %arg0, %c0_i32, %c0_i32_0 : i32, i32, i32
  }
  func.func @transform_1(%arg0: i32, %arg1: i32) -> (i32, i32, i32) {
    %c0_i32 = arith.constant 0 : i32
    %c0_i32_0 = arith.constant 0 : i32
    %c0_i32_1 = arith.constant 0 : i32
    return %arg0, %c0_i32, %c0_i32_0 : i32, i32, i32
  }
  func.func @transform_2(%arg0: i32, %arg1: i32) -> (i32, i32) {
    %c0_i32 = arith.constant 0 : i32
    %c0_i32_0 = arith.constant 0 : i32
    %c0_i32_1 = arith.constant 0 : i32
    return %c0_i32, %c0_i32_0 : i32, i32
  }
  func.func @transform_3(%arg0: i32, %arg1: i32) -> (i32, i32, i32) {
    %c0_i32 = arith.constant 0 : i32
    %c0_i32_0 = arith.constant 0 : i32
    %c0_i32_1 = arith.constant 0 : i32
    return %arg1, %c0_i32, %c0_i32_0 : i32, i32, i32
  }
  func.func @transform_4(%arg0: i32, %arg1: i32) -> (i32, i32, i32) {
    %c0_i32 = arith.constant 0 : i32
    %c0_i32_0 = arith.constant 0 : i32
    %c0_i32_1 = arith.constant 0 : i32
    return %arg1, %c0_i32, %c0_i32_0 : i32, i32, i32
  }
  func.func @transform_5(%arg0: i32, %arg1: i32) -> (i32, i32, i32) {
    %c0_i32 = arith.constant 0 : i32
    %c0_i32_0 = arith.constant 0 : i32
    %c0_i32_1 = arith.constant 0 : i32
    return %arg1, %c0_i32, %c0_i32_0 : i32, i32, i32
  }
  func.func @transform_6(%arg0: i32, %arg1: i32) -> (i32, i32, i32) {
    %c0_i32 = arith.constant 0 : i32
    %c0_i32_0 = arith.constant 0 : i32
    %c0_i32_1 = arith.constant 0 : i32
    return %arg1, %c0_i32, %c0_i32_0 : i32, i32, i32
  }
  func.func @transform_7(%arg0: i32, %arg1: i32) -> (i32, i32, i32) {
    %c0_i32 = arith.constant 0 : i32
    %c0_i32_0 = arith.constant 0 : i32
    %c0_i32_1 = arith.constant 0 : i32
    return %arg1, %c0_i32, %c0_i32_0 : i32, i32, i32
  }
  func.func @transform_8(%arg0: i32, %arg1: i32) -> (i32, i32, i32) {
    %c0_i32 = arith.constant 0 : i32
    %c0_i32_0 = arith.constant 0 : i32
    %c0_i32_1 = arith.constant 0 : i32
    return %arg1, %c0_i32, %c0_i32_0 : i32, i32, i32
  }
  func.func @transform_9(%arg0: i32, %arg1: i32) -> (i32, i32, i32) {
    %c0_i32 = arith.constant 0 : i32
    %c0_i32_0 = arith.constant 0 : i32
    %c0_i32_1 = arith.constant 0 : i32
    return %arg1, %c0_i32, %c0_i32_0 : i32, i32, i32
  }
  func.func @transform_10(%arg0: i32, %arg1: i32) -> (i32, i32, i32) {
    %c0_i32 = arith.constant 0 : i32
    %c0_i32_0 = arith.constant 0 : i32
    %c0_i32_1 = arith.constant 0 : i32
    return %arg1, %c0_i32, %c0_i32_0 : i32, i32, i32
  }
  func.func @transform_11(%arg0: i32, %arg1: i32) -> (i32, i32, i32) {
    %c0_i32 = arith.constant 0 : i32
    %c0_i32_0 = arith.constant 0 : i32
    %c0_i32_1 = arith.constant 0 : i32
    return %arg1, %c0_i32, %c0_i32_0 : i32, i32, i32
  }
  func.func @transform_12(%arg0: i32, %arg1: i32) -> (i32, i32, i32) {
    %c0_i32 = arith.constant 0 : i32
    %c0_i32_0 = arith.constant 0 : i32
    %c0_i32_1 = arith.constant 0 : i32
    return %arg1, %c0_i32, %c0_i32_0 : i32, i32, i32
  }
  func.func @transform_13(%arg0: i32, %arg1: i32) -> (i32, i32, i32) {
    %c0_i32 = arith.constant 0 : i32
    %c0_i32_0 = arith.constant 0 : i32
    %c0_i32_1 = arith.constant 0 : i32
    return %arg1, %c0_i32, %c0_i32_0 : i32, i32, i32
  }
  func.func @transform_14(%arg0: i32, %arg1: i32) -> (i32, i32, i32) {
    %c0_i32 = arith.constant 0 : i32
    %c0_i32_0 = arith.constant 0 : i32
    %c0_i32_1 = arith.constant 0 : i32
    return %arg1, %c0_i32, %c0_i32_0 : i32, i32, i32
  }
  func.func @transform_15(%arg0: i32, %arg1: i32) -> (i32, i32, i32) {
    %c0_i32 = arith.constant 0 : i32
    %c0_i32_0 = arith.constant 0 : i32
    %c0_i32_1 = arith.constant 0 : i32
    return %arg1, %c0_i32, %c0_i32_0 : i32, i32, i32
  }
  func.func @transform_16(%arg0: i32, %arg1: i32) -> (i32, i32) {
    %c0_i32 = arith.constant 0 : i32
    %c0_i32_0 = arith.constant 0 : i32
    %c0_i32_1 = arith.constant 0 : i32
    return %c0_i32, %c0_i32_0 : i32, i32
  }
  func.func @transform_17(%arg0: i32, %arg1: i32) -> (i32, i32) {
    %c0_i32 = arith.constant 0 : i32
    %c0_i32_0 = arith.constant 0 : i32
    %c0_i32_1 = arith.constant 0 : i32
    return %c0_i32, %c0_i32_0 : i32, i32
  }
  func.func @transform_18(%arg0: i32, %arg1: i32) -> (i32, i32, i32) {
    %c0_i32 = arith.constant 0 : i32
    %c0_i32_0 = arith.constant 0 : i32
    %c0_i32_1 = arith.constant 0 : i32
    return %arg0, %c0_i32, %c0_i32_0 : i32, i32, i32
  }
}

</mosaic_0001>

<llo_original>
// kernel: tpu_custom_call.1
$region0: #{tpu_custom_call.1}
  #allocation0 [shape = 'u32[]', space=smem, size = 0x4, offset = 0x4, fixed_abs, tag = 'smem constant byte address 0x4 - core index']
  #allocation1 [shape = 'u32[144,128]{1,0:T(1,128)}', space=vmem, size = 0x12000, scoped, tag = 'internal scratch']
  #allocation2 [shape = 'f32[16,32]{1,0:T(8,128)}', space=vmem, size = 0x2000, scoped, tag = 'scratch operand']
  #allocation3 [shape = 'f32[18,32]{1,0:T(8,128)}', space=vmem, size = 0x3000, scoped, tag = 'scratch operand']
  %s0 = inlined_call_operand.vmem [shape: f32[2,16,32], index: 0, kind: input, shape index: {}]
  %s1 = inlined_call_operand.vmem [shape: f32[2,16,1], index: 1, kind: input, shape index: {}]
  %s2 = inlined_call_operand.vmem [shape: f32[16,32], index: 2, kind: input, shape index: {}]
  %s3 = inlined_call_operand.vmem [shape: bf16[2,32,32], index: 3, kind: input, shape index: {}]
  %s4 = inlined_call_operand.vmem [shape: f32[2,1,32], index: 4, kind: input, shape index: {}]
  %s5 = inlined_call_operand.vmem [shape: bf16[2,32,32], index: 5, kind: input, shape index: {}]
  %s6 = inlined_call_operand.vmem [shape: f32[2,1,32], index: 6, kind: input, shape index: {}]
  %s7 = inlined_call_operand.vmem [shape: f32[2,3,32], index: 7, kind: input, shape index: {}]
  %s8 = inlined_call_operand.vmem [shape: f32[2,1,32], index: 8, kind: input, shape index: {}]
  %s9 = inlined_call_operand.vmem [shape: f32[2,1,32], index: 9, kind: input, shape index: {}]
  %s10 = inlined_call_operand.vmem [shape: bf16[2,32,128], index: 10, kind: input, shape index: {}]
  %s11 = inlined_call_operand.vmem [shape: f32[2,1,128], index: 11, kind: input, shape index: {}]
  %s12 = inlined_call_operand.vmem [shape: bf16[2,128,32], index: 12, kind: input, shape index: {}]
  %s13 = inlined_call_operand.vmem [shape: f32[2,1,32], index: 13, kind: input, shape index: {}]
  %s14 = inlined_call_operand.vmem [shape: f32[2,1,32], index: 14, kind: input, shape index: {}]
  %s15 = inlined_call_operand.vmem [shape: f32[2,1,32], index: 15, kind: input, shape index: {}]
  %s16 = inlined_call_operand.vmem [shape: bf16[32,128], index: 16, kind: input, shape index: {}]
  %s17 = inlined_call_operand.vmem [shape: f32[1,128], index: 17, kind: input, shape index: {}]
  %s18 = inlined_call_operand.hbm [shape: f32[2,16,128], index: 18, kind: output, shape index: {}]
  %s19 = sld [smem:[#allocation0]]
  $region113: #{tpu_custom_call.1} parent=0
    _
  %s21 = ssub.s32 1, %s19
  %s22 = scalar_select 0, %s21, %s19
  $region1: #{tpu_custom_call.1} parent=0
    #allocation4 [shape = 'u8[16384]{0}', space=vmem, size = 0x4000, scoped, tag = 'output window, operand 0']
    #allocation5 [shape = 's32[2]{0}', space=sflag, size = 0x8, scoped, tag = 'scoped memory for tpu_custom_call.1']
    %23 = vsyncpa [#allocation5], 0
    %s24 = scalar_lea.sflag [#allocation5], 1
    %25 = vsyncpa %s24, 0
    loop: start=0, step=1, limit=6
    $region2: #{tpu_custom_call.1} parent=1 // loop_pre_header
      _
    $region3: #{tpu_custom_call.1} parent=1 // loop_header
      %s27 = sphi 0, %s31
      %p28 = scmp.ge.s32.totalorder %s27, 6
      %s34 = sphi 0, %s46
      %s35 = sphi 0, %s42
      %s36 = sphi 0, %s34
      %s37 = sphi 0, %s35
      %s38 = sphi 0, %s36
      %s39 = sphi 0, %s37
      %s49 = sphi 0, %s51
      %s52 = sphi 0, %s49
      %s53 = sphi 0, %s52
      %s69 = sphi 0, %s53
      %s75 = sphi 0, %s77
      %s78 = sphi 0, %s75
      %s79 = sphi 0, %s78
      %s95 = sphi 0, %s79
      %s99 = sphi 0, %s99
      %s101 = sphi 0, %s99
      %s102 = sphi 0, %s101
      %s116 = sphi 0, %s102
      %s122 = sphi 0, %s124
      %s125 = sphi 0, %s122
      %s126 = sphi 0, %s125
      %s142 = sphi 0, %s126
      %s148 = sphi 0, %s150
      %s151 = sphi 0, %s148
      %s152 = sphi 0, %s151
      %s168 = sphi 0, %s152
      %s174 = sphi 0, %s176
      %s177 = sphi 0, %s174
      %s178 = sphi 0, %s177
      %s194 = sphi 0, %s178
      %s200 = sphi 0, %s202
      %s203 = sphi 0, %s200
      %s204 = sphi 0, %s203
      %s220 = sphi 0, %s204
      %s226 = sphi 0, %s228
      %s229 = sphi 0, %s226
      %s230 = sphi 0, %s229
      %s246 = sphi 0, %s230
      %s252 = sphi 0, %s254
      %s255 = sphi 0, %s252
      %s256 = sphi 0, %s255
      %s272 = sphi 0, %s256
      %s278 = sphi 0, %s280
      %s281 = sphi 0, %s278
      %s282 = sphi 0, %s281
      %s298 = sphi 0, %s282
      %s304 = sphi 0, %s306
      %s307 = sphi 0, %s304
      %s308 = sphi 0, %s307
      %s324 = sphi 0, %s308
      %s330 = sphi 0, %s332
      %s333 = sphi 0, %s330
      %s334 = sphi 0, %s333
      %s350 = sphi 0, %s334
      %s356 = sphi 0, %s358
      %s359 = sphi 0, %s356
      %s360 = sphi 0, %s359
      %s376 = sphi 0, %s360
      %s382 = sphi 0, %s384
      %s385 = sphi 0, %s382
      %s386 = sphi 0, %s385
      %s402 = sphi 0, %s386
      %s408 = sphi 0, %s410
      %s411 = sphi 0, %s408
      %s412 = sphi 0, %s411
      %s428 = sphi 0, %s412
      %s434 = sphi 0, %s436
      %s437 = sphi 0, %s434
      %s438 = sphi 0, %s437
      %s454 = sphi 0, %s438
      %s458 = sphi 0, %s458
      %s460 = sphi 0, %s458
      %s461 = sphi 0, %s460
      %s475 = sphi 0, %s461
      %s479 = sphi 0, %s479
      %s481 = sphi 0, %s479
      %s482 = sphi 0, %s481
      %s496 = sphi 0, %s482
      %s502 = sphi 0, %s504
      %s505 = sphi 0, %s502
      %s506 = sphi 0, %s505
      %s522 = sphi 0, %s506
    $region4: #{tpu_custom_call.1} parent=1 // loop_header_branch
      %30 = sbr.rel (%p28) target = $region8
    $region5: #{tpu_custom_call.1} parent=1 // loop_body
      %s32 = ssub.s32 %s27, 1
      %s33 = ssub.s32 %s27, 2
      %s40 = sadd.s32 1, %s35
      %p41 = scmp.ge.s32.totalorder %s40, 2
      %s42 = scalar_select %p41, 0, %s40
      %s43 = sadd.s32 1, %s34
      %s44 = scalar_select %p41, %s43, %s34
      %p45 = scmp.ge.s32.totalorder %s44, 2
      %s46 = scalar_select %p45, 0, %s44
      %s47 = ssub.s32 %s34, %s46
      %p48 = scmp.eq.s32.totalorder %s47, 0
      %s50 = sadd.s32 %s49, 1
      %s51 = scalar_select %p48, %s49, %s50
      %p54 = pneg %p48
      %p55 = scmp.eq.s32.totalorder %s27, 3
      %p56 = por %p54, %p55
      %p57 = scmp.ne.s32.totalorder %s49, %s52
      %p58 = scmp.eq.s32.totalorder %s27, 0
      %p59 = por %p57, %p58
      %p60 = scmp.ne.s32.totalorder %s49, %s52
      %p61 = scmp.eq.s32.totalorder %s32, 3
      %p62 = por %p60, %p61
      %p63 = scmp.ne.s32.totalorder %s52, %s53
      %p64 = scmp.eq.s32.totalorder %s32, 0
      %p65 = por %p63, %p64
      %p66 = scmp.ne.s32.totalorder %s52, %s53
      %p67 = scmp.eq.s32.totalorder %s33, 3
      %p68 = por %p66, %p67
      %p70 = scmp.ne.s32.totalorder %s53, %s69
      %p71 = scmp.eq.s32.totalorder %s33, 0
      %p72 = por %p70, %p71
      %s73 = ssub.s32 %s34, %s46
      %p74 = scmp.eq.s32.totalorder %s73, 0
      %s76 = sadd.s32 %s75, 1
      %s77 = scalar_select %p74, %s75, %s76
      %p80 = pneg %p74
      %p81 = scmp.eq.s32.totalorder %s27, 3
      %p82 = por %p80, %p81
      %p83 = scmp.ne.s32.totalorder %s75, %s78
      %p84 = scmp.eq.s32.totalorder %s27, 0
      %p85 = por %p83, %p84
      %p86 = scmp.ne.s32.totalorder %s75, %s78
      %p87 = scmp.eq.s32.totalorder %s32, 3
      %p88 = por %p86, %p87
      %p89 = scmp.ne.s32.totalorder %s78, %s79
      %p90 = scmp.eq.s32.totalorder %s32, 0
      %p91 = por %p89, %p90
      %p92 = scmp.ne.s32.totalorder %s78, %s79
      %p93 = scmp.eq.s32.totalorder %s33, 3
      %p94 = por %p92, %p93
      %p96 = scmp.ne.s32.totalorder %s79, %s95
      %p97 = scmp.eq.s32.totalorder %s33, 0
      %p98 = por %p96, %p97
      %s100 = sadd.s32 %s99, 1
      %p103 = scmp.eq.s32.totalorder %s27, 3
      %p104 = scmp.ne.s32.totalorder %s99, %s101
      %p105 = scmp.eq.s32.totalorder %s27, 0
      %p106 = por %p104, %p105
      %p107 = scmp.ne.s32.totalorder %s99, %s101
      %p108 = scmp.eq.s32.totalorder %s32, 3
      %p109 = por %p107, %p108
      %p110 = scmp.ne.s32.totalorder %s101, %s102
      %p111 = scmp.eq.s32.totalorder %s32, 0
      %p112 = por %p110, %p111
      %p113 = scmp.ne.s32.totalorder %s101, %s102
      %p114 = scmp.eq.s32.totalorder %s33, 3
      %p115 = por %p113, %p114
      %p117 = scmp.ne.s32.totalorder %s102, %s116
      %p118 = scmp.eq.s32.totalorder %s33, 0
      %p119 = por %p117, %p118
      %s120 = ssub.s32 %s35, %s42
      %p121 = scmp.eq.s32.totalorder %s120, 0
      %s123 = sadd.s32 %s122, 1
      %s124 = scalar_select %p121, %s122, %s123
      %p127 = pneg %p121
      %p128 = scmp.eq.s32.totalorder %s27, 3
      %p129 = por %p127, %p128
      %p130 = scmp.ne.s32.totalorder %s122, %s125
      %p131 = scmp.eq.s32.totalorder %s27, 0
      %p132 = por %p130, %p131
      %p133 = scmp.ne.s32.totalorder %s122, %s125
      %p134 = scmp.eq.s32.totalorder %s32, 3
      %p135 = por %p133, %p134
      %p136 = scmp.ne.s32.totalorder %s125, %s126
      %p137 = scmp.eq.s32.totalorder %s32, 0
      %p138 = por %p136, %p137
      %p139 = scmp.ne.s32.totalorder %s125, %s126
      %p140 = scmp.eq.s32.totalorder %s33, 3
      %p141 = por %p139, %p140
      %p143 = scmp.ne.s32.totalorder %s126, %s142
      %p144 = scmp.eq.s32.totalorder %s33, 0
      %p145 = por %p143, %p144
      %s146 = ssub.s32 %s35, %s42
      %p147 = scmp.eq.s32.totalorder %s146, 0
      %s149 = sadd.s32 %s148, 1
      %s150 = scalar_select %p147, %s148, %s149
      %p153 = pneg %p147
      %p154 = scmp.eq.s32.totalorder %s27, 3
      %p155 = por %p153, %p154
      %p156 = scmp.ne.s32.totalorder %s148, %s151
      %p157 = scmp.eq.s32.totalorder %s27, 0
      %p158 = por %p156, %p157
      %p159 = scmp.ne.s32.totalorder %s148, %s151
      %p160 = scmp.eq.s32.totalorder %s32, 3
      %p161 = por %p159, %p160
      %p162 = scmp.ne.s32.totalorder %s151, %s152
      %p163 = scmp.eq.s32.totalorder %s32, 0
      %p164 = por %p162, %p163
      %p165 = scmp.ne.s32.totalorder %s151, %s152
      %p166 = scmp.eq.s32.totalorder %s33, 3
      %p167 = por %p165, %p166
      %p169 = scmp.ne.s32.totalorder %s152, %s168
      %p170 = scmp.eq.s32.totalorder %s33, 0
      %p171 = por %p169, %p170
      %s172 = ssub.s32 %s35, %s42
      %p173 = scmp.eq.s32.totalorder %s172, 0
      %s175 = sadd.s32 %s174, 1
      %s176 = scalar_select %p173, %s174, %s175
      %p179 = pneg %p173
      %p180 = scmp.eq.s32.totalorder %s27, 3
      %p181 = por %p179, %p180
      %p182 = scmp.ne.s32.totalorder %s174, %s177
      %p183 = scmp.eq.s32.totalorder %s27, 0
      %p184 = por %p182, %p183
      %p185 = scmp.ne.s32.totalorder %s174, %s177
      %p186 = scmp.eq.s32.totalorder %s32, 3
      %p187 = por %p185, %p186
      %p188 = scmp.ne.s32.totalorder %s177, %s178
      %p189 = scmp.eq.s32.totalorder %s32, 0
      %p190 = por %p188, %p189
      %p191 = scmp.ne.s32.totalorder %s177, %s178
      %p192 = scmp.eq.s32.totalorder %s33, 3
      %p193 = por %p191, %p192
      %p195 = scmp.ne.s32.totalorder %s178, %s194
      %p196 = scmp.eq.s32.totalorder %s33, 0
      %p197 = por %p195, %p196
      %s198 = ssub.s32 %s35, %s42
      %p199 = scmp.eq.s32.totalorder %s198, 0
      %s201 = sadd.s32 %s200, 1
      %s202 = scalar_select %p199, %s200, %s201
      %p205 = pneg %p199
      %p206 = scmp.eq.s32.totalorder %s27, 3
      %p207 = por %p205, %p206
      %p208 = scmp.ne.s32.totalorder %s200, %s203
      %p209 = scmp.eq.s32.totalorder %s27, 0
      %p210 = por %p208, %p209
      %p211 = scmp.ne.s32.totalorder %s200, %s203
      %p212 = scmp.eq.s32.totalorder %s32, 3
      %p213 = por %p211, %p212
      %p214 = scmp.ne.s32.totalorder %s203, %s204
      %p215 = scmp.eq.s32.totalorder %s32, 0
      %p216 = por %p214, %p215
      %p217 = scmp.ne.s32.totalorder %s203, %s204
      %p218 = scmp.eq.s32.totalorder %s33, 3
      %p219 = por %p217, %p218
      %p221 = scmp.ne.s32.totalorder %s204, %s220
      %p222 = scmp.eq.s32.totalorder %s33, 0
      %p223 = por %p221, %p222
      %s224 = ssub.s32 %s35, %s42
      %p225 = scmp.eq.s32.totalorder %s224, 0
      %s227 = sadd.s32 %s226, 1
      %s228 = scalar_select %p225, %s226, %s227
      %p231 = pneg %p225
      %p232 = scmp.eq.s32.totalorder %s27, 3
      %p233 = por %p231, %p232
      %p234 = scmp.ne.s32.totalorder %s226, %s229
      %p235 = scmp.eq.s32.totalorder %s27, 0
      %p236 = por %p234, %p235
      %p237 = scmp.ne.s32.totalorder %s226, %s229
      %p238 = scmp.eq.s32.totalorder %s32, 3
      %p239 = por %p237, %p238
      %p240 = scmp.ne.s32.totalorder %s229, %s230
      %p241 = scmp.eq.s32.totalorder %s32, 0
      %p242 = por %p240, %p241
      %p243 = scmp.ne.s32.totalorder %s229, %s230
      %p244 = scmp.eq.s32.totalorder %s33, 3
      %p245 = por %p243, %p244
      %p247 = scmp.ne.s32.totalorder %s230, %s246
      %p248 = scmp.eq.s32.totalorder %s33, 0
      %p249 = por %p247, %p248
      %s250 = ssub.s32 %s35, %s42
      %p251 = scmp.eq.s32.totalorder %s250, 0
      %s253 = sadd.s32 %s252, 1
      %s254 = scalar_select %p251, %s252, %s253
      %p257 = pneg %p251
      %p258 = scmp.eq.s32.totalorder %s27, 3
      %p259 = por %p257, %p258
      %p260 = scmp.ne.s32.totalorder %s252, %s255
      %p261 = scmp.eq.s32.totalorder %s27, 0
      %p262 = por %p260, %p261
      %p263 = scmp.ne.s32.totalorder %s252, %s255
      %p264 = scmp.eq.s32.totalorder %s32, 3
      %p265 = por %p263, %p264
      %p266 = scmp.ne.s32.totalorder %s255, %s256
      %p267 = scmp.eq.s32.totalorder %s32, 0
      %p268 = por %p266, %p267
      %p269 = scmp.ne.s32.totalorder %s255, %s256
      %p270 = scmp.eq.s32.totalorder %s33, 3
      %p271 = por %p269, %p270
      %p273 = scmp.ne.s32.totalorder %s256, %s272
      %p274 = scmp.eq.s32.totalorder %s33, 0
      %p275 = por %p273, %p274
      %s276 = ssub.s32 %s35, %s42
      %p277 = scmp.eq.s32.totalorder %s276, 0
      %s279 = sadd.s32 %s278, 1
      %s280 = scalar_select %p277, %s278, %s279
      %p283 = pneg %p277
      %p284 = scmp.eq.s32.totalorder %s27, 3
      %p285 = por %p283, %p284
      %p286 = scmp.ne.s32.totalorder %s278, %s281
      %p287 = scmp.eq.s32.totalorder %s27, 0
      %p288 = por %p286, %p287
      %p289 = scmp.ne.s32.totalorder %s278, %s281
      %p290 = scmp.eq.s32.totalorder %s32, 3
      %p291 = por %p289, %p290
      %p292 = scmp.ne.s32.totalorder %s281, %s282
      %p293 = scmp.eq.s32.totalorder %s32, 0
      %p294 = por %p292, %p293
      %p295 = scmp.ne.s32.totalorder %s281, %s282
      %p296 = scmp.eq.s32.totalorder %s33, 3
      %p297 = por %p295, %p296
      %p299 = scmp.ne.s32.totalorder %s282, %s298
      %p300 = scmp.eq.s32.totalorder %s33, 0
      %p301 = por %p299, %p300
      %s302 = ssub.s32 %s35, %s42
      %p303 = scmp.eq.s32.totalorder %s302, 0
      %s305 = sadd.s32 %s304, 1
      %s306 = scalar_select %p303, %s304, %s305
      %p309 = pneg %p303
      %p310 = scmp.eq.s32.totalorder %s27, 3
      %p311 = por %p309, %p310
      %p312 = scmp.ne.s32.totalorder %s304, %s307
      %p313 = scmp.eq.s32.totalorder %s27, 0
      %p314 = por %p312, %p313
      %p315 = scmp.ne.s32.totalorder %s304, %s307
      %p316 = scmp.eq.s32.totalorder %s32, 3
      %p317 = por %p315, %p316
      %p318 = scmp.ne.s32.totalorder %s307, %s308
      %p319 = scmp.eq.s32.totalorder %s32, 0
      %p320 = por %p318, %p319
      %p321 = scmp.ne.s32.totalorder %s307, %s308
      %p322 = scmp.eq.s32.totalorder %s33, 3
      %p323 = por %p321, %p322
      %p325 = scmp.ne.s32.totalorder %s308, %s324
      %p326 = scmp.eq.s32.totalorder %s33, 0
      %p327 = por %p325, %p326
      %s328 = ssub.s32 %s35, %s42
      %p329 = scmp.eq.s32.totalorder %s328, 0
      %s331 = sadd.s32 %s330, 1
      %s332 = scalar_select %p329, %s330, %s331
      %p335 = pneg %p329
      %p336 = scmp.eq.s32.totalorder %s27, 3
      %p337 = por %p335, %p336
      %p338 = scmp.ne.s32.totalorder %s330, %s333
      %p339 = scmp.eq.s32.totalorder %s27, 0
      %p340 = por %p338, %p339
      %p341 = scmp.ne.s32.totalorder %s330, %s333
      %p342 = scmp.eq.s32.totalorder %s32, 3
      %p343 = por %p341, %p342
      %p344 = scmp.ne.s32.totalorder %s333, %s334
      %p345 = scmp.eq.s32.totalorder %s32, 0
      %p346 = por %p344, %p345
      %p347 = scmp.ne.s32.totalorder %s333, %s334
      %p348 = scmp.eq.s32.totalorder %s33, 3
      %p349 = por %p347, %p348
      %p351 = scmp.ne.s32.totalorder %s334, %s350
      %p352 = scmp.eq.s32.totalorder %s33, 0
      %p353 = por %p351, %p352
      %s354 = ssub.s32 %s35, %s42
      %p355 = scmp.eq.s32.totalorder %s354, 0
      %s357 = sadd.s32 %s356, 1
      %s358 = scalar_select %p355, %s356, %s357
      %p361 = pneg %p355
      %p362 = scmp.eq.s32.totalorder %s27, 3
      %p363 = por %p361, %p362
      %p364 = scmp.ne.s32.totalorder %s356, %s359
      %p365 = scmp.eq.s32.totalorder %s27, 0
      %p366 = por %p364, %p365
      %p367 = scmp.ne.s32.totalorder %s356, %s359
      %p368 = scmp.eq.s32.totalorder %s32, 3
      %p369 = por %p367, %p368
      %p370 = scmp.ne.s32.totalorder %s359, %s360
      %p371 = scmp.eq.s32.totalorder %s32, 0
      %p372 = por %p370, %p371
      %p373 = scmp.ne.s32.totalorder %s359, %s360
      %p374 = scmp.eq.s32.totalorder %s33, 3
      %p375 = por %p373, %p374
      %p377 = scmp.ne.s32.totalorder %s360, %s376
      %p378 = scmp.eq.s32.totalorder %s33, 0
      %p379 = por %p377, %p378
      %s380 = ssub.s32 %s35, %s42
      %p381 = scmp.eq.s32.totalorder %s380, 0
      %s383 = sadd.s32 %s382, 1
      %s384 = scalar_select %p381, %s382, %s383
      %p387 = pneg %p381
      %p388 = scmp.eq.s32.totalorder %s27, 3
      %p389 = por %p387, %p388
      %p390 = scmp.ne.s32.totalorder %s382, %s385
      %p391 = scmp.eq.s32.totalorder %s27, 0
      %p392 = por %p390, %p391
      %p393 = scmp.ne.s32.totalorder %s382, %s385
      %p394 = scmp.eq.s32.totalorder %s32, 3
      %p395 = por %p393, %p394
      %p396 = scmp.ne.s32.totalorder %s385, %s386
      %p397 = scmp.eq.s32.totalorder %s32, 0
      %p398 = por %p396, %p397
      %p399 = scmp.ne.s32.totalorder %s385, %s386
      %p400 = scmp.eq.s32.totalorder %s33, 3
      %p401 = por %p399, %p400
      %p403 = scmp.ne.s32.totalorder %s386, %s402
      %p404 = scmp.eq.s32.totalorder %s33, 0
      %p405 = por %p403, %p404
      %s406 = ssub.s32 %s35, %s42
      %p407 = scmp.eq.s32.totalorder %s406, 0
      %s409 = sadd.s32 %s408, 1
      %s410 = scalar_select %p407, %s408, %s409
      %p413 = pneg %p407
      %p414 = scmp.eq.s32.totalorder %s27, 3
      %p415 = por %p413, %p414
      %p416 = scmp.ne.s32.totalorder %s408, %s411
      %p417 = scmp.eq.s32.totalorder %s27, 0
      %p418 = por %p416, %p417
      %p419 = scmp.ne.s32.totalorder %s408, %s411
      %p420 = scmp.eq.s32.totalorder %s32, 3
      %p421 = por %p419, %p420
      %p422 = scmp.ne.s32.totalorder %s411, %s412
      %p423 = scmp.eq.s32.totalorder %s32, 0
      %p424 = por %p422, %p423
      %p425 = scmp.ne.s32.totalorder %s411, %s412
      %p426 = scmp.eq.s32.totalorder %s33, 3
      %p427 = por %p425, %p426
      %p429 = scmp.ne.s32.totalorder %s412, %s428
      %p430 = scmp.eq.s32.totalorder %s33, 0
      %p431 = por %p429, %p430
      %s432 = ssub.s32 %s35, %s42
      %p433 = scmp.eq.s32.totalorder %s432, 0
      %s435 = sadd.s32 %s434, 1
      %s436 = scalar_select %p433, %s434, %s435
      %p439 = pneg %p433
      %p440 = scmp.eq.s32.totalorder %s27, 3
      %p441 = por %p439, %p440
      %p442 = scmp.ne.s32.totalorder %s434, %s437
      %p443 = scmp.eq.s32.totalorder %s27, 0
      %p444 = por %p442, %p443
      %p445 = scmp.ne.s32.totalorder %s434, %s437
      %p446 = scmp.eq.s32.totalorder %s32, 3
      %p447 = por %p445, %p446
      %p448 = scmp.ne.s32.totalorder %s437, %s438
      %p449 = scmp.eq.s32.totalorder %s32, 0
      %p450 = por %p448, %p449
      %p451 = scmp.ne.s32.totalorder %s437, %s438
      %p452 = scmp.eq.s32.totalorder %s33, 3
      %p453 = por %p451, %p452
      %p455 = scmp.ne.s32.totalorder %s438, %s454
      %p456 = scmp.eq.s32.totalorder %s33, 0
      %p457 = por %p455, %p456
      %s459 = sadd.s32 %s458, 1
      %p462 = scmp.eq.s32.totalorder %s27, 3
      %p463 = scmp.ne.s32.totalorder %s458, %s460
      %p464 = scmp.eq.s32.totalorder %s27, 0
      %p465 = por %p463, %p464
      %p466 = scmp.ne.s32.totalorder %s458, %s460
      %p467 = scmp.eq.s32.totalorder %s32, 3
      %p468 = por %p466, %p467
      %p469 = scmp.ne.s32.totalorder %s460, %s461
      %p470 = scmp.eq.s32.totalorder %s32, 0
      %p471 = por %p469, %p470
      %p472 = scmp.ne.s32.totalorder %s460, %s461
      %p473 = scmp.eq.s32.totalorder %s33, 3
      %p474 = por %p472, %p473
      %p476 = scmp.ne.s32.totalorder %s461, %s475
      %p477 = scmp.eq.s32.totalorder %s33, 0
      %p478 = por %p476, %p477
      %s480 = sadd.s32 %s479, 1
      %p483 = scmp.eq.s32.totalorder %s27, 3
      %p484 = scmp.ne.s32.totalorder %s479, %s481
      %p485 = scmp.eq.s32.totalorder %s27, 0
      %p486 = por %p484, %p485
      %p487 = scmp.ne.s32.totalorder %s479, %s481
      %p488 = scmp.eq.s32.totalorder %s32, 3
      %p489 = por %p487, %p488
      %p490 = scmp.ne.s32.totalorder %s481, %s482
      %p491 = scmp.eq.s32.totalorder %s32, 0
      %p492 = por %p490, %p491
      %p493 = scmp.ne.s32.totalorder %s481, %s482
      %p494 = scmp.eq.s32.totalorder %s33, 3
      %p495 = por %p493, %p494
      %p497 = scmp.ne.s32.totalorder %s482, %s496
      %p498 = scmp.eq.s32.totalorder %s33, 0
      %p499 = por %p497, %p498
      %s500 = ssub.s32 %s34, %s46
      %p501 = scmp.eq.s32.totalorder %s500, 0
      %s503 = sadd.s32 %s502, 1
      %s504 = scalar_select %p501, %s502, %s503
      %p507 = pneg %p501
      %p508 = scmp.eq.s32.totalorder %s27, 3
      %p509 = por %p507, %p508
      %p510 = scmp.ne.s32.totalorder %s502, %s505
      %p511 = scmp.eq.s32.totalorder %s27, 0
      %p512 = por %p510, %p511
      %p513 = scmp.ne.s32.totalorder %s502, %s505
      %p514 = scmp.eq.s32.totalorder %s32, 3
      %p515 = por %p513, %p514
      %p516 = scmp.ne.s32.totalorder %s505, %s506
      %p517 = scmp.eq.s32.totalorder %s32, 0
      %p518 = por %p516, %p517
      %p519 = scmp.ne.s32.totalorder %s505, %s506
      %p520 = scmp.eq.s32.totalorder %s33, 3
      %p521 = por %p519, %p520
      %p523 = scmp.ne.s32.totalorder %s506, %s522
      %p524 = scmp.eq.s32.totalorder %s33, 0
      %p525 = por %p523, %p524
      %p526 = scmp.le.s32.totalorder 1, %s27
      %p527 = scmp.lt.s32.totalorder %s27, 5
      %p528 = pnand %p526, %p527
      %p529 = pneg %p528
      // Predicated region
      $region9: #{tpu_custom_call.1} parent=5 // pred_check
        _
      $region10: #{tpu_custom_call.1} parent=5 // pred_check_branch
        %531 = sbr.rel (%p528) target = $region12
      $region11: #{tpu_custom_call.1} parent=5 // pred_region
        %s532 = ssub.s32 %s27, 1
        // Predicated region
        $region13: #{tpu_custom_call.1} parent=11 // pred_check
          %p533 = pneg %p112
        $region14: #{tpu_custom_call.1} parent=11 // pred_check_branch
          %535 = sbr.rel (%p533) target = $region16
        $region15: #{tpu_custom_call.1} parent=11 // pred_region
          _
        $region16: #{tpu_custom_call.1} parent=11 // pred_fallthru
          _
        // Predicated region
        $region17: #{tpu_custom_call.1} parent=11 // pred_check
          %p536 = pneg %p471
        $region18: #{tpu_custom_call.1} parent=11 // pred_check_branch
          %538 = sbr.rel (%p536) target = $region20
        $region19: #{tpu_custom_call.1} parent=11 // pred_region
          _
        $region20: #{tpu_custom_call.1} parent=11 // pred_fallthru
          _
        // Predicated region
        $region21: #{tpu_custom_call.1} parent=11 // pred_check
          %p539 = pneg %p492
        $region22: #{tpu_custom_call.1} parent=11 // pred_check_branch
          %541 = sbr.rel (%p539) target = $region24
        $region23: #{tpu_custom_call.1} parent=11 // pred_region
          _
        $region24: #{tpu_custom_call.1} parent=11 // pred_fallthru
          _
      $region12: #{tpu_custom_call.1} parent=5 // pred_fallthru
        _
      %p542 = scmp.lt.s32.totalorder %s27, 4
      // Predicated region
      $region25: #{tpu_custom_call.1} parent=5 // pred_check
        %p543 = pneg %p542
      $region26: #{tpu_custom_call.1} parent=5 // pred_check_branch
        %545 = sbr.rel (%p543) target = $region28
      $region27: #{tpu_custom_call.1} parent=5 // pred_region
        // Predicated region
        $region29: #{tpu_custom_call.1} parent=27 // pred_check
          %p546 = pneg %p59
        $region30: #{tpu_custom_call.1} parent=27 // pred_check_branch
          %548 = sbr.rel (%p546) target = $region32
        $region31: #{tpu_custom_call.1} parent=27 // pred_region
          %p549 = scmp.lt.s32.totalorder %s34, 1
          %s550 = scalar_select %p549, %s34, 1
          %s551 = smul.addr %s550, 2
          %s552 = smul.addr %s551, 8
          %s553 = scalar_lea.vmem %s0, %s552
        $region32: #{tpu_custom_call.1} parent=27 // pred_fallthru
          _
        // Predicated region
        $region33: #{tpu_custom_call.1} parent=27 // pred_check
          %p554 = pneg %p85
        $region34: #{tpu_custom_call.1} parent=27 // pred_check_branch
          %556 = sbr.rel (%p554) target = $region36
        $region35: #{tpu_custom_call.1} parent=27 // pred_region
          %p557 = scmp.lt.s32.totalorder %s34, 1
          %s558 = scalar_select %p557, %s34, 1
          %s559 = smul.addr %s558, 2
          %s560 = smul.addr %s559, 8
          %s561 = scalar_lea.vmem %s1, %s560
        $region36: #{tpu_custom_call.1} parent=27 // pred_fallthru
          _
        // Predicated region
        $region37: #{tpu_custom_call.1} parent=27 // pred_check
          %p562 = pneg %p132
        $region38: #{tpu_custom_call.1} parent=27 // pred_check_branch
          %564 = sbr.rel (%p562) target = $region40
        $region39: #{tpu_custom_call.1} parent=27 // pred_region
          %p565 = scmp.lt.s32.totalorder %s35, 1
          %s566 = scalar_select %p565, %s35, 1
          %s567 = smul.addr %s566, 4
          %s568 = smul.addr %s567, 4
          %s569 = scalar_lea.vmem %s3, %s568
        $region40: #{tpu_custom_call.1} parent=27 // pred_fallthru
          _
        // Predicated region
        $region41: #{tpu_custom_call.1} parent=27 // pred_check
          %p570 = pneg %p158
        $region42: #{tpu_custom_call.1} parent=27 // pred_check_branch
          %572 = sbr.rel (%p570) target = $region44
        $region43: #{tpu_custom_call.1} parent=27 // pred_region
          %p573 = scmp.lt.s32.totalorder %s35, 1
          %s574 = scalar_select %p573, %s35, 1
          %s575 = scalar_lea.vmem %s4, %s574
        $region44: #{tpu_custom_call.1} parent=27 // pred_fallthru
          _
        // Predicated region
        $region45: #{tpu_custom_call.1} parent=27 // pred_check
          %p576 = pneg %p184
        $region46: #{tpu_custom_call.1} parent=27 // pred_check_branch
          %578 = sbr.rel (%p576) target = $region48
        $region47: #{tpu_custom_call.1} parent=27 // pred_region
          %p579 = scmp.lt.s32.totalorder %s35, 1
          %s580 = scalar_select %p579, %s35, 1
          %s581 = smul.addr %s580, 4
          %s582 = smul.addr %s581, 4
          %s583 = scalar_lea.vmem %s5, %s582
        $region48: #{tpu_custom_call.1} parent=27 // pred_fallthru
          _
        // Predicated region
        $region49: #{tpu_custom_call.1} parent=27 // pred_check
          %p584 = pneg %p210
        $region50: #{tpu_custom_call.1} parent=27 // pred_check_branch
          %586 = sbr.rel (%p584) target = $region52
        $region51: #{tpu_custom_call.1} parent=27 // pred_region
          %p587 = scmp.lt.s32.totalorder %s35, 1
          %s588 = scalar_select %p587, %s35, 1
          %s589 = scalar_lea.vmem %s6, %s588
        $region52: #{tpu_custom_call.1} parent=27 // pred_fallthru
          _
        // Predicated region
        $region53: #{tpu_custom_call.1} parent=27 // pred_check
          %p590 = pneg %p236
        $region54: #{tpu_custom_call.1} parent=27 // pred_check_branch
          %592 = sbr.rel (%p590) target = $region56
        $region55: #{tpu_custom_call.1} parent=27 // pred_region
          %p593 = scmp.lt.s32.totalorder %s35, 1
          %s594 = scalar_select %p593, %s35, 1
          %s595 = smul.addr %s594, 4
          %s596 = scalar_lea.vmem %s7, %s595
        $region56: #{tpu_custom_call.1} parent=27 // pred_fallthru
          _
        // Predicated region
        $region57: #{tpu_custom_call.1} parent=27 // pred_check
          %p597 = pneg %p262
        $region58: #{tpu_custom_call.1} parent=27 // pred_check_branch
          %599 = sbr.rel (%p597) target = $region60
        $region59: #{tpu_custom_call.1} parent=27 // pred_region
          %p600 = scmp.lt.s32.totalorder %s35, 1
          %s601 = scalar_select %p600, %s35, 1
          %s602 = scalar_lea.vmem %s8, %s601
        $region60: #{tpu_custom_call.1} parent=27 // pred_fallthru
          _
        // Predicated region
        $region61: #{tpu_custom_call.1} parent=27 // pred_check
          %p603 = pneg %p288
        $region62: #{tpu_custom_call.1} parent=27 // pred_check_branch
          %605 = sbr.rel (%p603) target = $region64
        $region63: #{tpu_custom_call.1} parent=27 // pred_region
          %p606 = scmp.lt.s32.totalorder %s35, 1
          %s607 = scalar_select %p606, %s35, 1
          %s608 = scalar_lea.vmem %s9, %s607
        $region64: #{tpu_custom_call.1} parent=27 // pred_fallthru
          _
        // Predicated region
        $region65: #{tpu_custom_call.1} parent=27 // pred_check
          %p609 = pneg %p314
        $region66: #{tpu_custom_call.1} parent=27 // pred_check_branch
          %611 = sbr.rel (%p609) target = $region68
        $region67: #{tpu_custom_call.1} parent=27 // pred_region
          %p612 = scmp.lt.s32.totalorder %s35, 1
          %s613 = scalar_select %p612, %s35, 1
          %s614 = smul.addr %s613, 4
          %s615 = smul.addr %s614, 4
          %s616 = scalar_lea.vmem %s10, %s615
        $region68: #{tpu_custom_call.1} parent=27 // pred_fallthru
          _
        // Predicated region
        $region69: #{tpu_custom_call.1} parent=27 // pred_check
          %p617 = pneg %p340
        $region70: #{tpu_custom_call.1} parent=27 // pred_check_branch
          %619 = sbr.rel (%p617) target = $region72
        $region71: #{tpu_custom_call.1} parent=27 // pred_region
          %p620 = scmp.lt.s32.totalorder %s35, 1
          %s621 = scalar_select %p620, %s35, 1
          %s622 = scalar_lea.vmem %s11, %s621
        $region72: #{tpu_custom_call.1} parent=27 // pred_fallthru
          _
        // Predicated region
        $region73: #{tpu_custom_call.1} parent=27 // pred_check
          %p623 = pneg %p366
        $region74: #{tpu_custom_call.1} parent=27 // pred_check_branch
          %625 = sbr.rel (%p623) target = $region76
        $region75: #{tpu_custom_call.1} parent=27 // pred_region
          %p626 = scmp.lt.s32.totalorder %s35, 1
          %s627 = scalar_select %p626, %s35, 1
          %s628 = smul.addr %s627, 16
          %s629 = smul.addr %s628, 4
          %s630 = scalar_lea.vmem %s12, %s629
        $region76: #{tpu_custom_call.1} parent=27 // pred_fallthru
          _
        // Predicated region
        $region77: #{tpu_custom_call.1} parent=27 // pred_check
          %p631 = pneg %p392
        $region78: #{tpu_custom_call.1} parent=27 // pred_check_branch
          %633 = sbr.rel (%p631) target = $region80
        $region79: #{tpu_custom_call.1} parent=27 // pred_region
          %p634 = scmp.lt.s32.totalorder %s35, 1
          %s635 = scalar_select %p634, %s35, 1
          %s636 = scalar_lea.vmem %s13, %s635
        $region80: #{tpu_custom_call.1} parent=27 // pred_fallthru
          _
        // Predicated region
        $region81: #{tpu_custom_call.1} parent=27 // pred_check
          %p637 = pneg %p418
        $region82: #{tpu_custom_call.1} parent=27 // pred_check_branch
          %639 = sbr.rel (%p637) target = $region84
        $region83: #{tpu_custom_call.1} parent=27 // pred_region
          %p640 = scmp.lt.s32.totalorder %s35, 1
          %s641 = scalar_select %p640, %s35, 1
          %s642 = scalar_lea.vmem %s14, %s641
        $region84: #{tpu_custom_call.1} parent=27 // pred_fallthru
          _
        // Predicated region
        $region85: #{tpu_custom_call.1} parent=27 // pred_check
          %p643 = pneg %p444
        $region86: #{tpu_custom_call.1} parent=27 // pred_check_branch
          %645 = sbr.rel (%p643) target = $region88
        $region87: #{tpu_custom_call.1} parent=27 // pred_region
          %p646 = scmp.lt.s32.totalorder %s35, 1
          %s647 = scalar_select %p646, %s35, 1
          %s648 = scalar_lea.vmem %s15, %s647
        $region88: #{tpu_custom_call.1} parent=27 // pred_fallthru
          _
      $region28: #{tpu_custom_call.1} parent=5 // pred_fallthru
        _
      %p649 = scmp.le.s32.totalorder 1, %s27
      %p650 = scmp.lt.s32.totalorder %s27, 5
      %p651 = pnand %p649, %p650
      %p652 = pneg %p651
      // Predicated region
      $region89: #{tpu_custom_call.1} parent=5 // pred_check
        _
      $region90: #{tpu_custom_call.1} parent=5 // pred_check_branch
        %654 = sbr.rel (%p651) target = $region92
      $region91: #{tpu_custom_call.1} parent=5 // pred_region
        %s655 = ssub.s32 %s27, 1
        %p656 = scmp.lt.s32.totalorder %s36, 1
        %s657 = scalar_select %p656, %s36, 1
        %s658 = smul.addr %s657, 2
        %s659 = smul.addr %s658, 8
        %s660 = scalar_lea.vmem %s0, %s659
        %p661 = pneg %p65
        %p662 = pneg %p62
        %p663 = scmp.lt.s32.totalorder %s36, 1
        %s664 = scalar_select %p663, %s36, 1
        %s665 = smul.addr %s664, 2
        %s666 = smul.addr %s665, 8
        %s667 = scalar_lea.vmem %s1, %s666
        %p668 = pneg %p91
        %p669 = pneg %p88
        %p670 = pneg %p112
        %p671 = pneg %p109
        %p672 = scmp.lt.s32.totalorder %s37, 1
        %s673 = scalar_select %p672, %s37, 1
        %s674 = smul.addr %s673, 4
        %s675 = smul.addr %s674, 4
        %s676 = scalar_lea.vmem %s3, %s675
        %p677 = pneg %p138
        %p678 = pneg %p135
        %p679 = scmp.lt.s32.totalorder %s37, 1
        %s680 = scalar_select %p679, %s37, 1
        %s681 = scalar_lea.vmem %s4, %s680
        %p682 = pneg %p164
        %p683 = pneg %p161
        %p684 = scmp.lt.s32.totalorder %s37, 1
        %s685 = scalar_select %p684, %s37, 1
        %s686 = smul.addr %s685, 4
        %s687 = smul.addr %s686, 4
        %s688 = scalar_lea.vmem %s5, %s687
        %p689 = pneg %p190
        %p690 = pneg %p187
        %p691 = scmp.lt.s32.totalorder %s37, 1
        %s692 = scalar_select %p691, %s37, 1
        %s693 = scalar_lea.vmem %s6, %s692
        %p694 = pneg %p216
        %p695 = pneg %p213
        %p696 = scmp.lt.s32.totalorder %s37, 1
        %s697 = scalar_select %p696, %s37, 1
        %s698 = smul.addr %s697, 4
        %s699 = scalar_lea.vmem %s7, %s698
        %p700 = pneg %p242
        %p701 = pneg %p239
        %p702 = scmp.lt.s32.totalorder %s37, 1
        %s703 = scalar_select %p702, %s37, 1
        %s704 = scalar_lea.vmem %s8, %s703
        %p705 = pneg %p268
        %p706 = pneg %p265
        %p707 = scmp.lt.s32.totalorder %s37, 1
        %s708 = scalar_select %p707, %s37, 1
        %s709 = scalar_lea.vmem %s9, %s708
        %p710 = pneg %p294
        %p711 = pneg %p291
        %p712 = scmp.lt.s32.totalorder %s37, 1
        %s713 = scalar_select %p712, %s37, 1
        %s714 = smul.addr %s713, 4
        %s715 = smul.addr %s714, 4
        %s716 = scalar_lea.vmem %s10, %s715
        %p717 = pneg %p320
        %p718 = pneg %p317
        %p719 = scmp.lt.s32.totalorder %s37, 1
        %s720 = scalar_select %p719, %s37, 1
        %s721 = scalar_lea.vmem %s11, %s720
        %p722 = pneg %p346
        %p723 = pneg %p343
        %p724 = scmp.lt.s32.totalorder %s37, 1
        %s725 = scalar_select %p724, %s37, 1
        %s726 = smul.addr %s725, 16
        %s727 = smul.addr %s726, 4
        %s728 = scalar_lea.vmem %s12, %s727
        %p729 = pneg %p372
        %p730 = pneg %p369
        %p731 = scmp.lt.s32.totalorder %s37, 1
        %s732 = scalar_select %p731, %s37, 1
        %s733 = scalar_lea.vmem %s13, %s732
        %p734 = pneg %p398
        %p735 = pneg %p395
        %p736 = scmp.lt.s32.totalorder %s37, 1
        %s737 = scalar_select %p736, %s37, 1
        %s738 = scalar_lea.vmem %s14, %s737
        %p739 = pneg %p424
        %p740 = pneg %p421
        %p741 = scmp.lt.s32.totalorder %s37, 1
        %s742 = scalar_select %p741, %s37, 1
        %s743 = scalar_lea.vmem %s15, %s742
        %p744 = pneg %p450
        %p745 = pneg %p447
        %p746 = pneg %p471
        %p747 = pneg %p468
        %p748 = pneg %p492
        %p749 = pneg %p489
        %p750 = pneg %p518
        %p751 = pneg %p515
        %s752 = sand.u32 %s505, 1
        %s753 = scalar_lea.sflag [#allocation5], %s752
        %s754 = sand.u32 %s505, 1
        %s755 = smul.addr %s754, 16
        %s756 = scalar_lea.vmem [#allocation4], %s755
        %p757 = scmp.lt.s32.totalorder %s36, 1
        %s758 = scalar_select %p757, %s36, 1
        %s759 = smul.addr %s758, 2
        %s760 = smul.addr %s759, 8
        %s761 = scalar_lea.vmem %s0, %s760
        %p762 = scmp.lt.s32.totalorder %s36, 1
        %s763 = scalar_select %p762, %s36, 1
        %s764 = smul.addr %s763, 2
        %s765 = smul.addr %s764, 8
        %s766 = scalar_lea.vmem %s1, %s765
        %p767 = scmp.lt.s32.totalorder %s37, 1
        %s768 = scalar_select %p767, %s37, 1
        %s769 = smul.addr %s768, 4
        %s770 = smul.addr %s769, 4
        %s771 = scalar_lea.vmem %s3, %s770
        %p772 = scmp.lt.s32.totalorder %s37, 1
        %s773 = scalar_select %p772, %s37, 1
        %s774 = scalar_lea.vmem %s4, %s773
        %p775 = scmp.lt.s32.totalorder %s37, 1
        %s776 = scalar_select %p775, %s37, 1
        %s777 = smul.addr %s776, 4
        %s778 = smul.addr %s777, 4
        %s779 = scalar_lea.vmem %s5, %s778
        %p780 = scmp.lt.s32.totalorder %s37, 1
        %s781 = scalar_select %p780, %s37, 1
        %s782 = scalar_lea.vmem %s6, %s781
        %p783 = scmp.lt.s32.totalorder %s37, 1
        %s784 = scalar_select %p783, %s37, 1
        %s785 = smul.addr %s784, 4
        %s786 = scalar_lea.vmem %s7, %s785
        %p787 = scmp.lt.s32.totalorder %s37, 1
        %s788 = scalar_select %p787, %s37, 1
        %s789 = scalar_lea.vmem %s8, %s788
        %p790 = scmp.lt.s32.totalorder %s37, 1
        %s791 = scalar_select %p790, %s37, 1
        %s792 = scalar_lea.vmem %s9, %s791
        %p793 = scmp.lt.s32.totalorder %s37, 1
        %s794 = scalar_select %p793, %s37, 1
        %s795 = smul.addr %s794, 4
        %s796 = smul.addr %s795, 4
        %s797 = scalar_lea.vmem %s10, %s796
        %p798 = scmp.lt.s32.totalorder %s37, 1
        %s799 = scalar_select %p798, %s37, 1
        %s800 = scalar_lea.vmem %s11, %s799
        %p801 = scmp.lt.s32.totalorder %s37, 1
        %s802 = scalar_select %p801, %s37, 1
        %s803 = smul.addr %s802, 16
        %s804 = smul.addr %s803, 4
        %s805 = scalar_lea.vmem %s12, %s804
        %p806 = scmp.lt.s32.totalorder %s37, 1
        %s807 = scalar_select %p806, %s37, 1
        %s808 = scalar_lea.vmem %s13, %s807
        %p809 = scmp.lt.s32.totalorder %s37, 1
        %s810 = scalar_select %p809, %s37, 1
        %s811 = scalar_lea.vmem %s14, %s810
        %p812 = scmp.lt.s32.totalorder %s37, 1
        %s813 = scalar_select %p812, %s37, 1
        %s814 = scalar_lea.vmem %s15, %s813
        %v816 = vld [vmem:[%s766] sm:$0xff]
        %v817 = vld [vmem:[%s766 + $0x8] sm:$0xff]
        %p818 = scmp.eq.s32.totalorder %s37, 0
        // Predicated region
        $region93: #{tpu_custom_call.1} parent=91 // pred_check
          %p819 = pneg %p818
        $region94: #{tpu_custom_call.1} parent=91 // pred_check_branch
          %821 = sbr.rel (%p819) target = $region96
        $region95: #{tpu_custom_call.1} parent=91 // pred_region
          %v822 = vld [vmem:[%s761] sm:$0xff]
          %v823 = vld [vmem:[%s761 + $0x8] sm:$0xff]
          %v824 = vld [vmem:[%s2] sm:$0xff]
          %v825 = vld [vmem:[%s2 + $0x8] sm:$0xff]
          %v826 = vadd.f32 %v822, %v824
          %v827 = vadd.f32 %v823, %v825
          %vm828 = vcmask 261120
          %829 = vst.msk [vmem:[#allocation2] sm:$0xff] %vm828, %v826
          %830 = vst.msk [vmem:[#allocation2 + $0x8] sm:$0xff] %vm828, %v827
          %831 = vst.msk [vmem:[#allocation3] sm:$0xff] %vm828, 0.0
          %832 = vst.msk [vmem:[#allocation3 + $0x8] sm:$0xff] %vm828, 0.0
          %vm833 = vcmask 254976
          %834 = vst.msk [vmem:[#allocation3 + $0x10] sm:$0x3] %vm833, 0.0
        $region96: #{tpu_custom_call.1} parent=91 // pred_fallthru
          _
        %v835 = vld [vmem:[#allocation2] sm:$0xff]
        %v836 = vld [vmem:[#allocation2 + $0x8] sm:$0xff]
        %838 = vset.pattern.permute.xlu0 0
        %839 = vperm.xlu0 %838, %v816
        %v840 = vpop.permute.xlu0 %839
        %843 = vset.pattern.permute.xlu0 0
        %844 = vperm.xlu0 %843, %v817
        %v845 = vpop.permute.xlu0 %844
        %v847 = vmul.f32 %v835, %v840
        %v848 = vmul.f32 %v836, %v845
        %v849 = vpack.c.bf16 %v848, %v847
        %v850 = vld [vmem:[%s771] sm:$0xf]
        %v851 = vld [vmem:[%s771 + $0x4] sm:$0xf]
        %v852 = vld [vmem:[%s771 + $0x8] sm:$0xf]
        %v853 = vld [vmem:[%s771 + $0xc] sm:$0xf]
        %v854 = vld [vmem:[%s774] sm:$0x1]
        %v856 = vlaneseq
        %v857 = vshrl.u32 %v856, 7
        %v858 = vsub.s32 0, %v857
        %v859 = vrot.slane %v854, %v858
        %v865 = vunpack.c.l.b16 %v850
        %v866 = vunpack.c.l.b16 %v851
        %v867 = vunpack.c.l.b16 %v852
        %v868 = vunpack.c.l.b16 %v853
        %v869 = vpack.c.b16 %v866, %v865
        %v870 = vpack.c.b16 %v868, %v867
        %vm873 = vcmask 261120
        %v875 = vsel %vm873, %v849, 0
        %877 = vmatprep.subr.bf16.mxu0 0
        %878 = vmatpush1.bf16.msra.mxu0 %v869
        %879 = vmatprep.subr.bf16.mxu0 0
        %880 = vmatpush1.bf16.msra.mxu0 %v870
        %881 = vmatprep.subr.bf16.mxu0 0
        %882 = vmatpush1.bf16.msra.mxu0 0
        %883 = vmatprep.subr.bf16.mxu0 0
        %884 = vmatpush1.bf16.msra.mxu0 0
        %885 = vmatprep.subr.bf16.mxu0 0
        %886 = vmatpush1.bf16.msra.mxu0 0
        %887 = vmatprep.subr.bf16.mxu0 0
        %888 = vmatpush1.bf16.msra.mxu0 0
        %889 = vmatprep.subr.bf16.mxu0 0
        %890 = vmatpush1.bf16.msra.mxu0 0
        %891 = vmatprep.subr.bf16.mxu0 0
        %892 = vmatpush1.bf16.msra.mxu0 0
        %893 = vmatprep.subr.bf16.mxu0 0
        %894 = vmatpush1.bf16.msra.mxu0 0
        %895 = vmatprep.subr.bf16.mxu0 0
        %896 = vmatpush1.bf16.msra.mxu0 0
        %897 = vmatprep.subr.bf16.mxu0 0
        %898 = vmatpush1.bf16.msra.mxu0 0
        %899 = vmatprep.subr.bf16.mxu0 0
        %900 = vmatpush1.bf16.msra.mxu0 0
        %901 = vmatprep.subr.bf16.mxu0 0
        %902 = vmatpush1.bf16.msra.mxu0 0
        %903 = vmatprep.subr.bf16.mxu0 0
        %904 = vmatpush1.bf16.msra.mxu0 0
        %905 = vmatprep.subr.bf16.mxu0 0
        %906 = vmatpush1.bf16.msra.mxu0 0
        %907 = vmatprep.subr.bf16.mxu0 0
        %908 = vmatpush1.bf16.msra.mxu0 0
        %909 = vmatprep.mubr.bf16.mxu0 0
        %910 = vmatmul.mubr.bf16.gmra.mrb[0].mxu0 %v875
        %v911 = vpop.f32.mrb[0].mxu0
        %v912 = vadd.f32 %v859, %v911
        %v913 = vpop.f32.mrb[0].mxu0
        %v914 = vpop.f32.mrb[0].mxu0
        %v915 = vadd.f32 %v859, %v914
        %v916 = vpop.f32.mrb[0].mxu0
        %917 = vdwg.mxu0
        %v918 = vld [vmem:[%s779] sm:$0xf]
        %v919 = vld [vmem:[%s779 + $0x4] sm:$0xf]
        %v920 = vld [vmem:[%s779 + $0x8] sm:$0xf]
        %v921 = vld [vmem:[%s779 + $0xc] sm:$0xf]
        %v922 = vld [vmem:[%s782] sm:$0x1]
        %v924 = vlaneseq
        %v925 = vshrl.u32 %v924, 7
        %v926 = vsub.s32 0, %v925
        %v927 = vrot.slane %v922, %v926
        %v933 = vunpack.c.l.b16 %v918
        %v934 = vunpack.c.l.b16 %v919
        %v935 = vunpack.c.l.b16 %v920
        %v936 = vunpack.c.l.b16 %v921
        %v937 = vpack.c.b16 %v934, %v933
        %v938 = vpack.c.b16 %v936, %v935
        %941 = vmatprep.subr.bf16.mxu0 0
        %942 = vmatpush1.bf16.msra.mxu0 %v937
        %943 = vmatprep.subr.bf16.mxu0 0
        %944 = vmatpush1.bf16.msra.mxu0 %v938
        %945 = vmatprep.subr.bf16.mxu0 0
        %946 = vmatpush1.bf16.msra.mxu0 0
        %947 = vmatprep.subr.bf16.mxu0 0
        %948 = vmatpush1.bf16.msra.mxu0 0
        %949 = vmatprep.subr.bf16.mxu0 0
        %950 = vmatpush1.bf16.msra.mxu0 0
        %951 = vmatprep.subr.bf16.mxu0 0
        %952 = vmatpush1.bf16.msra.mxu0 0
        %953 = vmatprep.subr.bf16.mxu0 0
        %954 = vmatpush1.bf16.msra.mxu0 0
        %955 = vmatprep.subr.bf16.mxu0 0
        %956 = vmatpush1.bf16.msra.mxu0 0
        %957 = vmatprep.subr.bf16.mxu0 0
        %958 = vmatpush1.bf16.msra.mxu0 0
        %959 = vmatprep.subr.bf16.mxu0 0
        %960 = vmatpush1.bf16.msra.mxu0 0
        %961 = vmatprep.subr.bf16.mxu0 0
        %962 = vmatpush1.bf16.msra.mxu0 0
        %963 = vmatprep.subr.bf16.mxu0 0
        %964 = vmatpush1.bf16.msra.mxu0 0
        %965 = vmatprep.subr.bf16.mxu0 0
        %966 = vmatpush1.bf16.msra.mxu0 0
        %967 = vmatprep.subr.bf16.mxu0 0
        %968 = vmatpush1.bf16.msra.mxu0 0
        %969 = vmatprep.subr.bf16.mxu0 0
        %970 = vmatpush1.bf16.msra.mxu0 0
        %971 = vmatprep.subr.bf16.mxu0 0
        %972 = vmatpush1.bf16.msra.mxu0 0
        %973 = vmatprep.mubr.bf16.mxu0 0
        %974 = vmatmul.mubr.bf16.gmra.mrb[0].mxu0 %v875
        %v975 = vpop.f32.mrb[0].mxu0
        %v976 = vadd.f32 %v927, %v975
        %v977 = vpop.f32.mrb[0].mxu0
        %v978 = vpop.f32.mrb[0].mxu0
        %v979 = vadd.f32 %v927, %v978
        %v980 = vpop.f32.mrb[0].mxu0
        %981 = vdwg.mxu0
        %v982 = vxor.u32 %v976, 2147483648
        %v983 = vxor.u32 %v979, 2147483648
        %v984 = vmul.f32 %v982, 1.442695
        %v985 = vpow.pop %v984
        %v986 = vmul.f32 %v983, 1.442695
        %v987 = vpow.pop %v986
        %v988 = vadd.f32 %v985, 1.0
        %v989 = vadd.f32 %v987, 1.0
        %v990 = vrcp.pop %v988
        %v991 = vmul.f32 1.0, %v990
        %v992 = vrcp.pop %v989
        %v993 = vmul.f32 1.0, %v992
        %v994 = vmul.f32 %v912, %v991
        %v995 = vmul.f32 %v915, %v993
        %v996 = vmul.f32 %v994, %v840
        %v997 = vmul.f32 %v995, %v845
        %998 = vst.msk [vmem:[#allocation3 + $0x1] sm:$0xff] %vm873, %v996
        %999 = vst.msk [vmem:[#allocation3 + $0x9] sm:$0xff] %vm873, %v997
        %v1000 = vld [vmem:[%s786] sm:$0x7]
        %v1001 = vld [vmem:[#allocation3] sm:$0xff]
        %v1002 = vld [vmem:[#allocation3 + $0x8] sm:$0xff]
        %v1003 = vlaneseq
        %v1004 = vshrl.u32 %v1003, 7
        %v1005 = vsub.s32 0, %v1004
        %v1006 = vrot.slane %v1000, %v1005
        %v1007 = vmul.f32 %v1001, %v1006
        %v1008 = vmul.f32 %v1002, %v1006
        %v1009 = vadd.f32 %v1007, 0.0
        %v1010 = vadd.f32 %v1008, 0.0
        %v1011 = vld [vmem:[#allocation3 + $0x1] sm:$0xff]
        %v1012 = vld [vmem:[#allocation3 + $0x9] sm:$0xff]
        %v1013 = vlaneseq
        %v1014 = vshrl.u32 %v1013, 7
        %v1015 = vsub.s32 1, %v1014
        %v1016 = vrot.slane %v1000, %v1015
        %v1017 = vmul.f32 %v1011, %v1016
        %v1018 = vmul.f32 %v1012, %v1016
        %v1019 = vadd.f32 %v1009, %v1017
        %v1020 = vadd.f32 %v1010, %v1018
        %v1021 = vld [vmem:[#allocation3 + $0x2] sm:$0xff]
        %v1022 = vld [vmem:[#allocation3 + $0xa] sm:$0xff]
        %v1023 = vlaneseq
        %v1024 = vshrl.u32 %v1023, 7
        %v1025 = vsub.s32 2, %v1024
        %v1026 = vrot.slane %v1000, %v1025
        %v1027 = vmul.f32 %v1021, %v1026
        %v1028 = vmul.f32 %v1022, %v1026
        %v1029 = vadd.f32 %v1019, %v1027
        %v1030 = vadd.f32 %v1020, %v1028
        %v1031 = vadd.f32 %v1029, %v847
        %v1032 = vadd.f32 %v1030, %v848
        %v1033 = vld [vmem:[%s789] sm:$0x1]
        %v1034 = vld [vmem:[%s792] sm:$0x1]
        %v1035 = vsel %vm873, %v1031, 0.0
        %1036 = vadd.xlane.f32.xlu0 %v1035
        %v1037 = vpop.xlane.xlu0 %1036
        %v1038 = vsel %vm873, %v1032, 0.0
        %1039 = vadd.xlane.f32.xlu0 %v1038
        %v1040 = vpop.xlane.xlu0 %1039
        %v1041 = vrcp.pop 32.0
        %v1042 = vmul.f32 %v1037, %v1041
        %v1043 = vmul.f32 %v1040, %v1041
        %v1044 = vsub.f32 %v1031, %v1042
        %v1045 = vsub.f32 %v1032, %v1043
        %v1046 = vmul.f32 %v1044, %v1044
        %v1047 = vmul.f32 %v1045, %v1045
        %v1048 = vsel %vm873, %v1046, 0.0
        %1049 = vadd.xlane.f32.xlu0 %v1048
        %v1050 = vpop.xlane.xlu0 %1049
        %v1051 = vsel %vm873, %v1047, 0.0
        %1052 = vadd.xlane.f32.xlu0 %v1051
        %v1053 = vpop.xlane.xlu0 %1052
        %v1054 = vmul.f32 %v1050, %v1041
        %v1055 = vmul.f32 %v1053, %v1041
        %v1056 = vadd.f32 %v1054, 1e-05
        %v1057 = vadd.f32 %v1055, 1e-05
        %v1058 = vrsqrt.pop %v1056
        %v1059 = vrsqrt.pop %v1057
        %v1060 = vmul.f32 %v1044, %v1058
        %v1061 = vmul.f32 %v1045, %v1059
        %v1063 = vlaneseq
        %v1064 = vshrl.u32 %v1063, 7
        %v1065 = vsub.s32 0, %v1064
        %v1066 = vrot.slane %v1033, %v1065
        %v1068 = vmul.f32 %v1060, %v1066
        %v1069 = vmul.f32 %v1061, %v1066
        %v1071 = vlaneseq
        %v1072 = vshrl.u32 %v1071, 7
        %v1073 = vsub.s32 0, %v1072
        %v1074 = vrot.slane %v1034, %v1073
        %v1076 = vadd.f32 %v1068, %v1074
        %v1077 = vadd.f32 %v1069, %v1074
        %v1078 = vpack.c.bf16 %v1077, %v1076
        %v1079 = vld [vmem:[%s797] sm:$0xf]
        %v1080 = vld [vmem:[%s797 + $0x4] sm:$0xf]
        %v1081 = vld [vmem:[%s797 + $0x8] sm:$0xf]
        %v1082 = vld [vmem:[%s797 + $0xc] sm:$0xf]
        %v1083 = vld [vmem:[%s800] sm:$0x1]
        %v1085 = vlaneseq
        %v1086 = vshrl.u32 %v1085, 7
        %v1087 = vsub.s32 0, %v1086
        %v1088 = vrot.slane %v1083, %v1087
        %v1094 = vunpack.c.l.b16 %v1079
        %v1095 = vunpack.c.l.b16 %v1080
        %v1096 = vunpack.c.l.b16 %v1081
        %v1097 = vunpack.c.l.b16 %v1082
        %v1098 = vpack.c.b16 %v1095, %v1094
        %v1099 = vpack.c.b16 %v1097, %v1096
        %v1103 = vsel %vm873, %v1078, 0
        %1105 = vmatprep.subr.bf16.mxu0 0
        %1106 = vmatpush1.bf16.msra.mxu0 %v1098
        %1107 = vmatprep.subr.bf16.mxu0 0
        %1108 = vmatpush1.bf16.msra.mxu0 %v1099
        %1109 = vmatprep.subr.bf16.mxu0 0
        %1110 = vmatpush1.bf16.msra.mxu0 0
        %1111 = vmatprep.subr.bf16.mxu0 0
        %1112 = vmatpush1.bf16.msra.mxu0 0
        %1113 = vmatprep.subr.bf16.mxu0 0
        %1114 = vmatpush1.bf16.msra.mxu0 0
        %1115 = vmatprep.subr.bf16.mxu0 0
        %1116 = vmatpush1.bf16.msra.mxu0 0
        %1117 = vmatprep.subr.bf16.mxu0 0
        %1118 = vmatpush1.bf16.msra.mxu0 0
        %1119 = vmatprep.subr.bf16.mxu0 0
        %1120 = vmatpush1.bf16.msra.mxu0 0
        %1121 = vmatprep.subr.bf16.mxu0 0
        %1122 = vmatpush1.bf16.msra.mxu0 0
        %1123 = vmatprep.subr.bf16.mxu0 0
        %1124 = vmatpush1.bf16.msra.mxu0 0
        %1125 = vmatprep.subr.bf16.mxu0 0
        %1126 = vmatpush1.bf16.msra.mxu0 0
        %1127 = vmatprep.subr.bf16.mxu0 0
        %1128 = vmatpush1.bf16.msra.mxu0 0
        %1129 = vmatprep.subr.bf16.mxu0 0
        %1130 = vmatpush1.bf16.msra.mxu0 0
        %1131 = vmatprep.subr.bf16.mxu0 0
        %1132 = vmatpush1.bf16.msra.mxu0 0
        %1133 = vmatprep.subr.bf16.mxu0 0
        %1134 = vmatpush1.bf16.msra.mxu0 0
        %1135 = vmatprep.subr.bf16.mxu0 0
        %1136 = vmatpush1.bf16.msra.mxu0 0
        %1137 = vmatprep.mubr.bf16.mxu0 0
        %1138 = vmatmul.mubr.bf16.gmra.mrb[0].mxu0 %v1103
        %v1139 = vpop.f32.mrb[0].mxu0
        %v1140 = vadd.f32 %v1088, %v1139
        %v1141 = vpop.f32.mrb[0].mxu0
        %v1142 = vpop.f32.mrb[0].mxu0
        %v1143 = vadd.f32 %v1088, %v1142
        %v1144 = vpop.f32.mrb[0].mxu0
        %1145 = vdwg.mxu0
        %v1146 = vmax.f32 %v1140, 0.0
        %v1147 = vmax.f32 %v1143, 0.0
        %v1148 = vpack.c.bf16 %v1147, %v1146
        %v1149 = vld [vmem:[%s805] sm:$0xf]
        %v1150 = vld [vmem:[%s805 + $0x4] sm:$0xf]
        %v1151 = vld [vmem:[%s805 + $0x8] sm:$0xf]
        %v1152 = vld [vmem:[%s805 + $0xc] sm:$0xf]
        %v1153 = vld [vmem:[%s805 + $0x10] sm:$0xf]
        %v1154 = vld [vmem:[%s805 + $0x14] sm:$0xf]
        %v1155 = vld [vmem:[%s805 + $0x18] sm:$0xf]
        %v1156 = vld [vmem:[%s805 + $0x1c] sm:$0xf]
        %v1157 = vld [vmem:[%s805 + $0x20] sm:$0xf]
        %v1158 = vld [vmem:[%s805 + $0x24] sm:$0xf]
        %v1159 = vld [vmem:[%s805 + $0x28] sm:$0xf]
        %v1160 = vld [vmem:[%s805 + $0x2c] sm:$0xf]
        %v1161 = vld [vmem:[%s805 + $0x30] sm:$0xf]
        %v1162 = vld [vmem:[%s805 + $0x34] sm:$0xf]
        %v1163 = vld [vmem:[%s805 + $0x38] sm:$0xf]
        %v1164 = vld [vmem:[%s805 + $0x3c] sm:$0xf]
        %v1165 = vld [vmem:[%s808] sm:$0x1]
        %v1167 = vlaneseq
        %v1168 = vshrl.u32 %v1167, 7
        %v1169 = vsub.s32 0, %v1168
        %v1170 = vrot.slane %v1165, %v1169
        %v1188 = vunpack.c.l.b16 %v1149
        %v1189 = vunpack.c.l.b16 %v1150
        %v1190 = vunpack.c.l.b16 %v1151
        %v1191 = vunpack.c.l.b16 %v1152
        %v1192 = vunpack.c.l.b16 %v1153
        %v1193 = vunpack.c.l.b16 %v1154
        %v1194 = vunpack.c.l.b16 %v1155
        %v1195 = vunpack.c.l.b16 %v1156
        %v1196 = vunpack.c.l.b16 %v1157
        %v1197 = vunpack.c.l.b16 %v1158
        %v1198 = vunpack.c.l.b16 %v1159
        %v1199 = vunpack.c.l.b16 %v1160
        %v1200 = vunpack.c.l.b16 %v1161
        %v1201 = vunpack.c.l.b16 %v1162
        %v1202 = vunpack.c.l.b16 %v1163
        %v1203 = vunpack.c.l.b16 %v1164
        %v1204 = vpack.c.b16 %v1189, %v1188
        %v1205 = vpack.c.b16 %v1191, %v1190
        %v1206 = vpack.c.b16 %v1193, %v1192
        %v1207 = vpack.c.b16 %v1195, %v1194
        %v1208 = vpack.c.b16 %v1197, %v1196
        %v1209 = vpack.c.b16 %v1199, %v1198
        %v1210 = vpack.c.b16 %v1201, %v1200
        %v1211 = vpack.c.b16 %v1203, %v1202
        %1220 = vmatprep.subr.bf16.mxu0 0
        %1221 = vmatpush1.bf16.msra.mxu0 %v1204
        %1222 = vmatprep.subr.bf16.mxu0 0
        %1223 = vmatpush1.bf16.msra.mxu0 %v1205
        %1224 = vmatprep.subr.bf16.mxu0 0
        %1225 = vmatpush1.bf16.msra.mxu0 %v1206
        %1226 = vmatprep.subr.bf16.mxu0 0
        %1227 = vmatpush1.bf16.msra.mxu0 %v1207
        %1228 = vmatprep.subr.bf16.mxu0 0
        %1229 = vmatpush1.bf16.msra.mxu0 %v1208
        %1230 = vmatprep.subr.bf16.mxu0 0
        %1231 = vmatpush1.bf16.msra.mxu0 %v1209
        %1232 = vmatprep.subr.bf16.mxu0 0
        %1233 = vmatpush1.bf16.msra.mxu0 %v1210
        %1234 = vmatprep.subr.bf16.mxu0 0
        %1235 = vmatpush1.bf16.msra.mxu0 %v1211
        %1236 = vmatprep.subr.bf16.mxu0 0
        %1237 = vmatpush1.bf16.msra.mxu0 0
        %1238 = vmatprep.subr.bf16.mxu0 0
        %1239 = vmatpush1.bf16.msra.mxu0 0
        %1240 = vmatprep.subr.bf16.mxu0 0
        %1241 = vmatpush1.bf16.msra.mxu0 0
        %1242 = vmatprep.subr.bf16.mxu0 0
        %1243 = vmatpush1.bf16.msra.mxu0 0
        %1244 = vmatprep.subr.bf16.mxu0 0
        %1245 = vmatpush1.bf16.msra.mxu0 0
        %1246 = vmatprep.subr.bf16.mxu0 0
        %1247 = vmatpush1.bf16.msra.mxu0 0
        %1248 = vmatprep.subr.bf16.mxu0 0
        %1249 = vmatpush1.bf16.msra.mxu0 0
        %1250 = vmatprep.subr.bf16.mxu0 0
        %1251 = vmatpush1.bf16.msra.mxu0 0
        %1252 = vmatprep.mubr.bf16.mxu0 0
        %1253 = vmatmul.mubr.bf16.gmra.mrb[0].mxu0 %v1148
        %v1254 = vpop.f32.mrb[0].mxu0
        %v1255 = vadd.f32 %v1170, %v1254
        %v1256 = vpop.f32.mrb[0].mxu0
        %v1257 = vpop.f32.mrb[0].mxu0
        %v1258 = vadd.f32 %v1170, %v1257
        %v1259 = vpop.f32.mrb[0].mxu0
        %1260 = vdwg.mxu0
        %v1261 = vadd.f32 %v1255, %v1076
        %v1262 = vadd.f32 %v1258, %v1077
        %v1263 = vld [vmem:[%s811] sm:$0x1]
        %v1264 = vld [vmem:[%s814] sm:$0x1]
        %v1265 = vsel %vm873, %v1261, 0.0
        %1266 = vadd.xlane.f32.xlu0 %v1265
        %v1267 = vpop.xlane.xlu0 %1266
        %v1268 = vsel %vm873, %v1262, 0.0
        %1269 = vadd.xlane.f32.xlu0 %v1268
        %v1270 = vpop.xlane.xlu0 %1269
        %v1271 = vmul.f32 %v1267, %v1041
        %v1272 = vmul.f32 %v1270, %v1041
        %v1273 = vsub.f32 %v1261, %v1271
        %v1274 = vsub.f32 %v1262, %v1272
        %v1275 = vmul.f32 %v1273, %v1273
        %v1276 = vmul.f32 %v1274, %v1274
        %v1277 = vsel %vm873, %v1275, 0.0
        %1278 = vadd.xlane.f32.xlu0 %v1277
        %v1279 = vpop.xlane.xlu0 %1278
        %v1280 = vsel %vm873, %v1276, 0.0
        %1281 = vadd.xlane.f32.xlu0 %v1280
        %v1282 = vpop.xlane.xlu0 %1281
        %v1283 = vmul.f32 %v1279, %v1041
        %v1284 = vmul.f32 %v1282, %v1041
        %v1285 = vadd.f32 %v1283, 1e-05
        %v1286 = vadd.f32 %v1284, 1e-05
        %v1287 = vrsqrt.pop %v1285
        %v1288 = vrsqrt.pop %v1286
        %v1289 = vmul.f32 %v1273, %v1287
        %v1290 = vmul.f32 %v1274, %v1288
        %v1292 = vlaneseq
        %v1293 = vshrl.u32 %v1292, 7
        %v1294 = vsub.s32 0, %v1293
        %v1295 = vrot.slane %v1263, %v1294
        %v1297 = vmul.f32 %v1289, %v1295
        %v1298 = vmul.f32 %v1290, %v1295
        %v1300 = vlaneseq
        %v1301 = vshrl.u32 %v1300, 7
        %v1302 = vsub.s32 0, %v1301
        %v1303 = vrot.slane %v1264, %v1302
        %v1305 = vadd.f32 %v1297, %v1303
        %v1306 = vadd.f32 %v1298, %v1303
        %v1307 = vtanh.pop %v1305
        %v1308 = vtanh.pop %v1306
        %1309 = vst.msk [vmem:[#allocation2] sm:$0xff] %vm873, %v1307
        %1310 = vst.msk [vmem:[#allocation2 + $0x8] sm:$0xff] %vm873, %v1308
        %p1311 = scmp.eq.s32.totalorder %s37, 1
        // Predicated region
        $region97: #{tpu_custom_call.1} parent=91 // pred_check
          %p1312 = pneg %p1311
        $region98: #{tpu_custom_call.1} parent=91 // pred_check_branch
          %1314 = sbr.rel (%p1312) target = $region100
        $region99: #{tpu_custom_call.1} parent=91 // pred_region
          %v1315 = vpack.c.bf16 %v1308, %v1307
          %v1316 = vld [vmem:[%s16] sm:$0xf]
          %v1317 = vld [vmem:[%s16 + $0x4] sm:$0xf]
          %v1318 = vld [vmem:[%s16 + $0x8] sm:$0xf]
          %v1319 = vld [vmem:[%s16 + $0xc] sm:$0xf]
          %v1320 = vld [vmem:[%s17] sm:$0x1]
          %v1322 = vlaneseq
          %v1323 = vshrl.u32 %v1322, 7
          %v1324 = vsub.s32 0, %v1323
          %v1325 = vrot.slane %v1320, %v1324
          %v1331 = vunpack.c.l.b16 %v1316
          %v1332 = vunpack.c.l.b16 %v1317
          %v1333 = vunpack.c.l.b16 %v1318
          %v1334 = vunpack.c.l.b16 %v1319
          %v1335 = vpack.c.b16 %v1332, %v1331
          %v1336 = vpack.c.b16 %v1334, %v1333
          %v1340 = vsel %vm873, %v1315, 0
          %1342 = vmatprep.subr.bf16.mxu0 0
          %1343 = vmatpush1.bf16.msra.mxu0 %v1335
          %1344 = vmatprep.subr.bf16.mxu0 0
          %1345 = vmatpush1.bf16.msra.mxu0 %v1336
          %1346 = vmatprep.subr.bf16.mxu0 0
          %1347 = vmatpush1.bf16.msra.mxu0 0
          %1348 = vmatprep.subr.bf16.mxu0 0
          %1349 = vmatpush1.bf16.msra.mxu0 0
          %1350 = vmatprep.subr.bf16.mxu0 0
          %1351 = vmatpush1.bf16.msra.mxu0 0
          %1352 = vmatprep.subr.bf16.mxu0 0
          %1353 = vmatpush1.bf16.msra.mxu0 0
          %1354 = vmatprep.subr.bf16.mxu0 0
          %1355 = vmatpush1.bf16.msra.mxu0 0
          %1356 = vmatprep.subr.bf16.mxu0 0
          %1357 = vmatpush1.bf16.msra.mxu0 0
          %1358 = vmatprep.subr.bf16.mxu0 0
          %1359 = vmatpush1.bf16.msra.mxu0 0
          %1360 = vmatprep.subr.bf16.mxu0 0
          %1361 = vmatpush1.bf16.msra.mxu0 0
          %1362 = vmatprep.subr.bf16.mxu0 0
          %1363 = vmatpush1.bf16.msra.mxu0 0
          %1364 = vmatprep.subr.bf16.mxu0 0
          %1365 = vmatpush1.bf16.msra.mxu0 0
          %1366 = vmatprep.subr.bf16.mxu0 0
          %1367 = vmatpush1.bf16.msra.mxu0 0
          %1368 = vmatprep.subr.bf16.mxu0 0
          %1369 = vmatpush1.bf16.msra.mxu0 0
          %1370 = vmatprep.subr.bf16.mxu0 0
          %1371 = vmatpush1.bf16.msra.mxu0 0
          %1372 = vmatprep.subr.bf16.mxu0 0
          %1373 = vmatpush1.bf16.msra.mxu0 0
          %1374 = vmatprep.mubr.bf16.mxu0 0
          %1375 = vmatmul.mubr.bf16.gmra.mrb[0].mxu0 %v1340
          %v1376 = vpop.f32.mrb[0].mxu0
          %v1377 = vadd.f32 %v1325, %v1376
          %v1378 = vpop.f32.mrb[0].mxu0
          %v1379 = vpop.f32.mrb[0].mxu0
          %v1380 = vadd.f32 %v1325, %v1379
          %v1381 = vpop.f32.mrb[0].mxu0
          %1382 = vdwg.mxu0
          %v1383 = vmul.f32 %v1377, %v840
          %v1384 = vmul.f32 %v1380, %v845
          %1385 = vst [vmem:[%s756] sm:$0xff] %v1383
          %1386 = vst [vmem:[%s756 + $0x8] sm:$0xff] %v1384
        $region100: #{tpu_custom_call.1} parent=91 // pred_fallthru
          _
        %s1387 = sand.u32 %s505, 1
        %s1388 = scalar_lea.sflag [#allocation5], %s1387
        %s1389 = sand.u32 %s505, 1
        %s1390 = smul.addr %s1389, 16
        %s1391 = scalar_lea.vmem [#allocation4], %s1390
        // Predicated region
        $region101: #{tpu_custom_call.1} parent=91 // pred_check
          %p1392 = pneg %p515
        $region102: #{tpu_custom_call.1} parent=91 // pred_check_branch
          %1394 = sbr.rel (%p1392) target = $region104
        $region103: #{tpu_custom_call.1} parent=91 // pred_region
          %s1396 = ssub.s32 256, 256
          %1397 = vsyncadd %s1388, %s1396
          %s1398 = smul.addr %s36, 2
          %s1399 = smul.addr %s1398, 128
          %s1400 = scalar_lea.hbm %s18, %s1399
          %s1401 = sshll.u32 %s1391, 4
          %s1402 = int_to_ptr.vmem [resolvable:$true] %s1401
          %1407 = dma.vmem_to_hbm [thread:$0]  %s1402, 256, %s1400, %s1388, 128, 128, 8
        $region104: #{tpu_custom_call.1} parent=91 // pred_fallthru
          _
      $region92: #{tpu_custom_call.1} parent=5 // pred_fallthru
        _
      %p1408 = scmp.le.s32.totalorder 2, %s27
      // Predicated region
      $region105: #{tpu_custom_call.1} parent=5 // pred_check
        %p1409 = pneg %p1408
      $region106: #{tpu_custom_call.1} parent=5 // pred_check_branch
        %1411 = sbr.rel (%p1409) target = $region108
      $region107: #{tpu_custom_call.1} parent=5 // pred_region
        %s1412 = ssub.s32 %s27, 2
        // Predicated region
        $region109: #{tpu_custom_call.1} parent=107 // pred_check
          %p1413 = pneg %p521
        $region110: #{tpu_custom_call.1} parent=107 // pred_check_branch
          %1415 = sbr.rel (%p1413) target = $region112
        $region111: #{tpu_custom_call.1} parent=107 // pred_region
          %s1416 = sand.u32 %s506, 1
          %s1417 = scalar_lea.sflag [#allocation5], %s1416
          %s1418 = sand.u32 %s506, 1
          %s1419 = smul.addr %s1418, 16
          %s1420 = scalar_lea.vmem [#allocation4], %s1419
          %1421 = dma.done %s1417, 256
        $region112: #{tpu_custom_call.1} parent=107 // pred_fallthru
          _
      $region108: #{tpu_custom_call.1} parent=5 // pred_fallthru
        _
    $region6: #{tpu_custom_call.1} parent=1 // loop_footer
      %s31 = sadd.s32 1, %s27
    $region7: #{tpu_custom_call.1} parent=1 // loop_footer_branch
      %26 = sbr.rel target = $region3
    $region8: #{tpu_custom_call.1} parent=1 // loop_exit
      _
    %1422 = vsyncpa [#allocation5], 1
    %s1423 = scalar_lea.sflag [#allocation5], 1
    %1424 = vsyncpa %s1423, 1

</llo_original>
